<compile_context>
chip_gen: v5e
topology: v5e:2x2
jax: 0.10.0
libtpu: 0.0.40
codegen_flags: <defaults>
</compile_context>

<pallas_src>
import jax
import jax.numpy as jnp
from jax.experimental import pallas as pl
from jax.experimental.pallas import tpu as pltpu

N_FEATURES = 32          # n_features fed to OSGDecoder (fc_head)
HIDDEN_DIM = 64          # OSGDecoder.hidden_dim
DECODER_OUTPUT_DIM = 32  # options['decoder_output_dim']
DEFAULT_TILE_M = 8192    # points (lane axis) per grid step; sweep 2048..16384 per chip


# ----------------------------------------------------------------------------
# Pallas kernel: OSGDecoder forward, channel-first.
#   x (32, T) -> h = softplus(W1 @ x + b1)            (64, T)
#            -> y = W2 @ h + b2                        (33, T)   [rows: rgb(32), sigma(1)]
#   rgb = sigmoid(y[0:32]) * (1 + 2e-3) - 1e-3 ; sigma = y[32:33]
# ----------------------------------------------------------------------------
def _osg_decoder_kernel(x_ref, w1_ref, b1_ref, w2_ref, b2_ref, sigma_ref, rgb_ref):
    x = x_ref[0]                                                     # (32, T)
    # First layer on the MXU, f32 accumulation.
    h = jnp.dot(w1_ref[...], x, preferred_element_type=jnp.float32)  # (64, T) f32
    h = jax.nn.softplus(h + b1_ref[...])                             # f32 activations (EUP)
    h = h.astype(w2_ref.dtype)
    # Merged sigma+rgb head: single (33, 64) @ (64, T) matmul.
    y = jnp.dot(w2_ref[...], h, preferred_element_type=jnp.float32)  # (33, T) f32
    y = y + b2_ref[...]
    # Rows [0:32] = rgb (sublane-aligned), row [32] = sigma (aligned: 32 % 8 == 0).
    rgb = jax.nn.sigmoid(y[0:DECODER_OUTPUT_DIM, :]) * (1.0 + 2 * 0.001) - 0.001
    rgb_ref[0] = rgb.astype(rgb_ref.dtype)
    sigma_ref[0] = y[DECODER_OUTPUT_DIM:DECODER_OUTPUT_DIM + 1, :].astype(sigma_ref.dtype)


def _choose_tile(m, max_tile):
    """Pick a lane-tile (multiple of 128, <= max_tile) that balances the grid."""
    m_128 = -(-m // 128) * 128
    num_tiles = max(1, -(-m_128 // max_tile))
    t = -(-m_128 // (num_tiles * 128)) * 128
    return t, num_tiles


def osg_decoder_pallas_cf(x_cf, w1, b1, w2, b2, *, tile_m=DEFAULT_TILE_M, out_dtype=None):
    """Channel-first OSGDecoder.

    Args:
      x_cf: (N, 32, M) point features (channel-first, as produced upstream).
      w1:   (64, 32) effective first-layer weight.
      b1:   (64, 1)  f32 bias.
      w2:   (33, 64) effective merged head weight, rows ordered [rgb(32), sigma(1)].
      b2:   (33, 1)  f32 bias, same row order.
    Returns:
      sigma_cf: (N, 1, M), rgb_cf: (N, 32, M)   (channel-first, lane-dense).
    """
    n, c, m = x_cf.shape
    assert c == N_FEATURES
    out_dtype = out_dtype or x_cf.dtype

    # Weights ride at the matmul input dtype (bf16 path available); biases stay f32.
    w1 = w1.astype(x_cf.dtype)
    w2 = w2.astype(x_cf.dtype)
    b1 = b1.astype(jnp.float32)
    b2 = b2.astype(jnp.float32)

    t, num_tiles = _choose_tile(m, tile_m)
    m_pad = t * num_tiles
    if m_pad != m:
        x_cf = jnp.pad(x_cf, ((0, 0), (0, 0), (0, m_pad - m)))

    grid = (n, num_tiles)
    const = lambda i, j: (0, 0)   # tiny weights stay resident every step

    bpe = jnp.dtype(x_cf.dtype).itemsize
    bpe_out = jnp.dtype(out_dtype).itemsize
    total_pts = n * m_pad
    cost = pl.CostEstimate(
        flops=2 * total_pts * (HIDDEN_DIM * N_FEATURES
                               + (1 + DECODER_OUTPUT_DIM) * HIDDEN_DIM),
        transcendentals=total_pts * (HIDDEN_DIM + DECODER_OUTPUT_DIM),
        bytes_accessed=total_pts * (N_FEATURES * bpe
                                    + (1 + DECODER_OUTPUT_DIM) * bpe_out),
    )

    sigma, rgb = pl.pallas_call(
        _osg_decoder_kernel,
        out_shape=(
            jax.ShapeDtypeStruct((n, 1, m_pad), out_dtype),
            jax.ShapeDtypeStruct((n, DECODER_OUTPUT_DIM, m_pad), out_dtype),
        ),
        grid_spec=pltpu.PrefetchScalarGridSpec(
            num_scalar_prefetch=0,
            grid=grid,
            in_specs=[
                pl.BlockSpec((1, N_FEATURES, t), lambda i, j: (i, 0, j)),
                pl.BlockSpec((HIDDEN_DIM, N_FEATURES), const),
                pl.BlockSpec((HIDDEN_DIM, 1), const),
                pl.BlockSpec((1 + DECODER_OUTPUT_DIM, HIDDEN_DIM), const),
                pl.BlockSpec((1 + DECODER_OUTPUT_DIM, 1), const),
            ],
            out_specs=[
                pl.BlockSpec((1, 1, t), lambda i, j: (i, 0, j)),
                pl.BlockSpec((1, DECODER_OUTPUT_DIM, t), lambda i, j: (i, 0, j)),
            ],
        ),
        compiler_params=pltpu.CompilerParams(
            dimension_semantics=("parallel", "parallel"),
            vmem_limit_bytes=64 << 20),
        cost_estimate=cost,
    )(x_cf, w1, b1, w2, b2)

    if m_pad != m:
        sigma = sigma[:, :, :m]
        rgb = rgb[:, :, :m]
    return sigma, rgb


# ----------------------------------------------------------------------------
# Parameters (mirrors StyleGAN FullyConnectedLayer: weight ~ randn(out, in)/lr_mul,
# bias = 0, effective weight = weight * lr_mul / sqrt(in)).  Stored in the original
# PyTorch row order (row 0 = sigma) so a plain reference can use them directly.
# ----------------------------------------------------------------------------
def init_osg_decoder_params(key, lr_multiplier=1.0):
    k1, k2 = jax.random.split(key)
    out2 = 1 + DECODER_OUTPUT_DIM

    w1_raw = jax.random.normal(k1, (HIDDEN_DIM, N_FEATURES), jnp.float32) / lr_multiplier
    w1_eff = w1_raw * (lr_multiplier / jnp.sqrt(jnp.float32(N_FEATURES)))   # (64, 32)
    b1_eff = jnp.zeros((HIDDEN_DIM,), jnp.float32)

    w2_raw = jax.random.normal(k2, (out2, HIDDEN_DIM), jnp.float32) / lr_multiplier
    w2_eff = w2_raw * (lr_multiplier / jnp.sqrt(jnp.float32(HIDDEN_DIM)))   # (33, 64)
    b2_eff = jnp.zeros((out2,), jnp.float32)

    return {"w1": w1_eff, "b1": b1_eff, "w2": w2_eff, "b2": b2_eff}


class OSGDecoderPallas:
    """JAX/Pallas equivalent of OSGDecoder.forward (the EG3D fc_head)."""

    def __init__(self, key, lr_multiplier=1.0, tile_m=DEFAULT_TILE_M):
        self.params = init_osg_decoder_params(key, lr_multiplier)
        self.tile_m = tile_m
        p = self.params
        # Kernel-order packed head: rgb rows first, sigma row last (sublane-aligned slices).
        self.w1_k = p["w1"]                                              # (64, 32)
        self.b1_k = p["b1"].reshape(HIDDEN_DIM, 1)
        self.w2_k = jnp.concatenate([p["w2"][1:], p["w2"][0:1]], axis=0)  # (33, 64)
        self.b2_k = jnp.concatenate([p["b2"][1:], p["b2"][0:1]]).reshape(-1, 1)

    def __call__(self, point_features, channel_first_output=False):
        # point_features: (N, C, M, 1) — matches the PyTorch call site.
        pf = jnp.squeeze(point_features, axis=-1)            # (N, C, M): no transpose needed
        sigma_cf, rgb_cf = osg_decoder_pallas_cf(
            pf, self.w1_k, self.b1_k, self.w2_k, self.b2_k, tile_m=self.tile_m)
        if channel_first_output:
            # Preferred for downstream (EG3D re-permutes to image layout anyway):
            # avoids any output transpose.
            return {"rgb": rgb_cf, "sigma": sigma_cf}
        # Match the original PyTorch OSGDecoder contract: (N, M, 32) / (N, M, 1).
        return {"rgb": jnp.transpose(rgb_cf, (0, 2, 1)),
                "sigma": jnp.transpose(sigma_cf, (0, 2, 1))}


class EG3DGeneratorFVPallas:
    """Partial EG3DGeneratorFV: only the fc_head (OSGDecoder) hot path is implementable
    from the provided code; it is the Pallas kernel above."""

    def __init__(self, key):
        self.fc_head = OSGDecoderPallas(key, lr_multiplier=1.0)
        # TODO(synk): MappingNetwork / Renderer / FeatureVolume / FeatureExtractor /
        # PositionEncoder / SuperresolutionHybrid* definitions were not provided.

    def forward_fc_head(self, point_features):
        return self.fc_head(point_features)


# ----------------------------------------------------------------------------
# Pure-JAX reference (follows the PyTorch code path exactly).
# ----------------------------------------------------------------------------
def osg_decoder_ref(point_features, params):
    pf = jnp.squeeze(point_features, axis=-1)
    pf = jnp.transpose(pf, (0, 2, 1))
    n, m, c = pf.shape
    x = pf.reshape(n * m, c)
    h = jax.nn.softplus(x @ params["w1"].T + params["b1"])
    y = h @ params["w2"].T + params["b2"]
    rgb = jax.nn.sigmoid(y[:, 1:]) * (1 + 2 * 0.001) - 0.001
    sigma = y[:, 0:1]
    return {"rgb": rgb.reshape(n, m, -1), "sigma": sigma.reshape(n, m, 1)}


if __name__ == "__main__":
    key = jax.random.PRNGKey(0)
    k_params, k_feat = jax.random.split(key)

    model = EG3DGeneratorFVPallas(k_params)

    # Small shapes: batch N=2, n_features C=32, M=300 sampled points per batch element
    # (deliberately not a multiple of 128 to exercise the pad-and-slice remainder path).
    # Layout matches the PyTorch call site: point_features (N, C, M, 1).
    N, C, M = 2, N_FEATURES, 300
    point_features = jax.random.normal(k_feat, (N, C, M, 1), jnp.float32)

    out = model.forward_fc_head(point_features)
    out = jax.block_until_ready(out)

    ref = osg_decoder_ref(point_features, model.fc_head.params)
    assert out["rgb"].shape == (N, M, DECODER_OUTPUT_DIM)
    assert out["sigma"].shape == (N, M, 1)
    assert jnp.allclose(out["rgb"], ref["rgb"], atol=1e-4, rtol=1e-4)
    assert jnp.allclose(out["sigma"], ref["sigma"], atol=1e-4, rtol=1e-4)

    print("KERNEL_OK")
</pallas_src>

<mosaic_0001>
module attributes {stable_mosaic.version = 11 : i64} {
  func.func @_osg_decoder_kernel(%arg0: i32, %arg1: i32, %arg2: memref<1x32x384xf32, #tpu.memory_space<vmem>>, %arg3: memref<64x32xf32, #tpu.memory_space<vmem>>, %arg4: memref<64x1xf32, #tpu.memory_space<vmem>>, %arg5: memref<33x64xf32, #tpu.memory_space<vmem>>, %arg6: memref<33x1xf32, #tpu.memory_space<vmem>>, %arg7: memref<1x1x384xf32, #tpu.memory_space<vmem>>, %arg8: memref<1x32x384xf32, #tpu.memory_space<vmem>>) attributes {dimension_semantics = [#tpu.dimension_semantics<parallel>, #tpu.dimension_semantics<parallel>], iteration_bounds = array<i64: 2, 1>, scalar_prefetch = 0 : i64, scratch_operands = 0 : i64, tpu.core_type = #tpu.core_type<tc>, window_params = [{transform_indices = @transform_0, window_bounds = array<i64: 1, 32, 384>}, {pipeline_mode = #tpu.pipeline_mode<synchronous>, transform_indices = @transform_1, window_bounds = array<i64: 64, 32>}, {pipeline_mode = #tpu.pipeline_mode<synchronous>, transform_indices = @transform_2, window_bounds = array<i64: 64, 1>}, {pipeline_mode = #tpu.pipeline_mode<synchronous>, transform_indices = @transform_3, window_bounds = array<i64: 33, 64>}, {pipeline_mode = #tpu.pipeline_mode<synchronous>, transform_indices = @transform_4, window_bounds = array<i64: 33, 1>}, {transform_indices = @transform_5, window_bounds = array<i64: 1, 1, 384>}, {transform_indices = @transform_6, window_bounds = array<i64: 1, 32, 384>}]} {
    %c0 = arith.constant 0 : index
    %c0_0 = arith.constant 0 : index
    %c0_1 = arith.constant 0 : index
    %0 = vector.load %arg2[%c0, %c0_0, %c0_1] : memref<1x32x384xf32, #tpu.memory_space<vmem>>, vector<1x32x384xf32>
    %1 = vector.shape_cast %0 : vector<1x32x384xf32> to vector<32x384xf32>
    %c0_2 = arith.constant 0 : index
    %c0_3 = arith.constant 0 : index
    %2 = vector.load %arg3[%c0_2, %c0_3] : memref<64x32xf32, #tpu.memory_space<vmem>>, vector<64x32xf32>
    %cst = arith.constant dense<0.000000e+00> : vector<64x384xf32>
    %3 = tpu.matmul %2, %1, %cst {dimension_numbers = #tpu.dot_dimension_numbers<[1], [0], [0], [1], [0, 0, 1, 1], [], []>} : vector<64x32xf32>, vector<32x384xf32>, vector<64x384xf32> -> vector<64x384xf32>
    %c0_4 = arith.constant 0 : index
    %c0_5 = arith.constant 0 : index
    %4 = vector.load %arg4[%c0_4, %c0_5] : memref<64x1xf32, #tpu.memory_space<vmem>>, vector<64x1xf32>
    %5 = vector.broadcast %4 : vector<64x1xf32> to vector<64x384xf32>
    %6 = arith.addf %3, %5 : vector<64x384xf32>
    %cst_6 = arith.constant 0.000000e+00 : f32
    %7 = vector.broadcast %cst_6 : f32 to vector<64x384xf32>
    %8 = arith.maximumf %6, %7 : vector<64x384xf32>
    %9 = vector.broadcast %cst_6 : f32 to vector<64x384xf32>
    %10 = arith.subf %6, %9 : vector<64x384xf32>
    %11 = arith.cmpf one, %10, %10 : vector<64x384xf32>
    %12 = vector.broadcast %cst_6 : f32 to vector<64x384xf32>
    %13 = arith.addf %6, %12 : vector<64x384xf32>
    %14 = math.absf %10 : vector<64x384xf32>
    %cst_7 = arith.constant 0.000000e+00 : f32
    %15 = vector.broadcast %cst_7 : f32 to vector<64x384xf32>
    %16 = arith.subf %15, %14 : vector<64x384xf32>
    %17 = math.exp %16 : vector<64x384xf32>
    %18 = math.log1p %17 : vector<64x384xf32>
    %19 = arith.addf %8, %18 : vector<64x384xf32>
    %20 = arith.select %11, %13, %19 : vector<64x384xi1>, vector<64x384xf32>
    %c0_8 = arith.constant 0 : index
    %c0_9 = arith.constant 0 : index
    %21 = vector.load %arg5[%c0_8, %c0_9] : memref<33x64xf32, #tpu.memory_space<vmem>>, vector<33x64xf32>
    %cst_10 = arith.constant dense<0.000000e+00> : vector<33x384xf32>
    %22 = tpu.matmul %21, %20, %cst_10 {dimension_numbers = #tpu.dot_dimension_numbers<[1], [0], [0], [1], [0, 0, 1, 1], [], []>} : vector<33x64xf32>, vector<64x384xf32>, vector<33x384xf32> -> vector<33x384xf32>
    %c0_11 = arith.constant 0 : index
    %c0_12 = arith.constant 0 : index
    %23 = vector.load %arg6[%c0_11, %c0_12] : memref<33x1xf32, #tpu.memory_space<vmem>>, vector<33x1xf32>
    %24 = vector.broadcast %23 : vector<33x1xf32> to vector<33x384xf32>
    %25 = arith.addf %22, %24 : vector<33x384xf32>
    %26 = vector.extract_strided_slice %25 {offsets = [0, 0], sizes = [32, 384], strides = [1, 1]} : vector<33x384xf32> to vector<32x384xf32>
    %27 = arith.negf %26 : vector<32x384xf32>
    %28 = math.exp %27 : vector<32x384xf32>
    %cst_13 = arith.constant 1.000000e+00 : f32
    %29 = vector.broadcast %cst_13 : f32 to vector<32x384xf32>
    %30 = arith.addf %29, %28 : vector<32x384xf32>
    %31 = arith.divf %29, %30 : vector<32x384xf32>
    %cst_14 = arith.constant 1.002000e+00 : f32
    %32 = vector.broadcast %cst_14 : f32 to vector<32x384xf32>
    %33 = arith.mulf %31, %32 : vector<32x384xf32>
    %cst_15 = arith.constant 1.000000e-03 : f32
    %34 = vector.broadcast %cst_15 : f32 to vector<32x384xf32>
    %35 = arith.subf %33, %34 : vector<32x384xf32>
    %c0_16 = arith.constant 0 : index
    %c0_17 = arith.constant 0 : index
    %c0_18 = arith.constant 0 : index
    %36 = vector.load %arg8[%c0_16, %c0_17, %c0_18] : memref<1x32x384xf32, #tpu.memory_space<vmem>>, vector<1x32x384xf32>
    %37 = vector.shape_cast %36 : vector<1x32x384xf32> to vector<32x384xf32>
    %38 = vector.shape_cast %35 : vector<32x384xf32> to vector<1x32x384xf32>
    tpu.vector_store %arg8[%c0_16, %c0_17, %c0_18], %38 {strides = array<i32>} : memref<1x32x384xf32, #tpu.memory_space<vmem>>, vector<1x32x384xf32>,
    %39 = vector.extract_strided_slice %25 {offsets = [32, 0], sizes = [1, 384], strides = [1, 1]} : vector<33x384xf32> to vector<1x384xf32>
    %c0_19 = arith.constant 0 : index
    %c0_20 = arith.constant 0 : index
    %c0_21 = arith.constant 0 : index
    %40 = vector.load %arg7[%c0_19, %c0_20, %c0_21] : memref<1x1x384xf32, #tpu.memory_space<vmem>>, vector<1x1x384xf32>
    %41 = vector.shape_cast %40 : vector<1x1x384xf32> to vector<1x384xf32>
    %42 = vector.shape_cast %39 : vector<1x384xf32> to vector<1x1x384xf32>
    tpu.vector_store %arg7[%c0_19, %c0_20, %c0_21], %42 {strides = array<i32>} : memref<1x1x384xf32, #tpu.memory_space<vmem>>, vector<1x1x384xf32>,
    return
  }
  func.func @transform_0(%arg0: i32, %arg1: i32) -> (i32, i32, i32) {
    %c0_i32 = arith.constant 0 : i32
    %c0_i32_0 = arith.constant 0 : i32
    return %arg0, %c0_i32, %arg1 : i32, i32, i32
  }
  func.func @transform_1(%arg0: i32, %arg1: i32) -> (i32, i32) {
    %c0_i32 = arith.constant 0 : i32
    %c0_i32_0 = arith.constant 0 : i32
    %c0_i32_1 = arith.constant 0 : i32
    return %c0_i32, %c0_i32_0 : i32, i32
  }
  func.func @transform_2(%arg0: i32, %arg1: i32) -> (i32, i32) {
    %c0_i32 = arith.constant 0 : i32
    %c0_i32_0 = arith.constant 0 : i32
    %c0_i32_1 = arith.constant 0 : i32
    return %c0_i32, %c0_i32_0 : i32, i32
  }
  func.func @transform_3(%arg0: i32, %arg1: i32) -> (i32, i32) {
    %c0_i32 = arith.constant 0 : i32
    %c0_i32_0 = arith.constant 0 : i32
    %c0_i32_1 = arith.constant 0 : i32
    return %c0_i32, %c0_i32_0 : i32, i32
  }
  func.func @transform_4(%arg0: i32, %arg1: i32) -> (i32, i32) {
    %c0_i32 = arith.constant 0 : i32
    %c0_i32_0 = arith.constant 0 : i32
    %c0_i32_1 = arith.constant 0 : i32
    return %c0_i32, %c0_i32_0 : i32, i32
  }
  func.func @transform_5(%arg0: i32, %arg1: i32) -> (i32, i32, i32) {
    %c0_i32 = arith.constant 0 : i32
    %c0_i32_0 = arith.constant 0 : i32
    return %arg0, %c0_i32, %arg1 : i32, i32, i32
  }
  func.func @transform_6(%arg0: i32, %arg1: i32) -> (i32, i32, i32) {
    %c0_i32 = arith.constant 0 : i32
    %c0_i32_0 = arith.constant 0 : i32
    return %arg0, %c0_i32, %arg1 : i32, i32, i32
  }
}

</mosaic_0001>

<llo_original>
// kernel: tpu_custom_call.1
$region0: #{tpu_custom_call.1}
  #allocation0 [shape = 'u32[]', space=smem, size = 0x4, offset = 0x4, fixed_abs, tag = 'smem constant byte address 0x4 - core index']
  #allocation1 [shape = 'u32[72,128]{1,0:T(1,128)}', space=vmem, size = 0x9000, scoped, tag = 'internal scratch']
  %s0 = inlined_call_operand.vmem [shape: f32[2,32,384], index: 0, kind: input, shape index: {}]
  %s1 = inlined_call_operand.vmem [shape: f32[64,32], index: 1, kind: input, shape index: {}]
  %s2 = inlined_call_operand.vmem [shape: f32[64,1], index: 2, kind: input, shape index: {}]
  %s3 = inlined_call_operand.hbm [shape: f32[33,64], index: 3, kind: input, shape index: {}]
  %s4 = inlined_call_operand.vmem [shape: f32[33,1], index: 4, kind: input, shape index: {}]
  %s5 = inlined_call_operand.hbm [shape: f32[2,1,384], index: 5, kind: output, shape index: {0}]
  %s6 = inlined_call_operand.hbm [shape: f32[2,32,384], index: 6, kind: output, shape index: {1}]
  %7 = xla_tuple %s5, %s6
  %s8 = sld [smem:[#allocation0]]
  $region65: #{tpu_custom_call.1} parent=0
    _
  %s10 = ssub.s32 1, %s8
  %s11 = scalar_select 0, %s10, %s8
  $region1: #{tpu_custom_call.1} parent=0
    #allocation2 [shape = 'u8[20480]{0}', space=vmem, size = 0x5000, scoped, tag = 'input window, operand 3, single buffered']
    #allocation3 [shape = 's32[2]{0}', space=sflag, size = 0x8, scoped, tag = 'scoped memory for tpu_custom_call.1']
    #allocation4 [shape = 's32[2]{0}', space=sflag, size = 0x8, scoped, tag = 'scoped memory for tpu_custom_call.1']
    #allocation5 [shape = 'u8[3072]{0}', space=vmem, size = 0xc00, scoped, tag = 'output window, operand 0']
    #allocation6 [shape = 'u8[98304]{0}', space=vmem, size = 0x18000, scoped, tag = 'output window, operand 1']
    #allocation7 [shape = 's32[2]{0}', space=sflag, size = 0x8, scoped, tag = 'scoped memory for tpu_custom_call.1']
    %12 = vsyncpa [#allocation3], 0
    %13 = vsyncpa [#allocation4], 0
    %s14 = scalar_lea.sflag [#allocation4], 1
    %15 = vsyncpa %s14, 0
    %16 = vsyncpa [#allocation7], 0
    %s17 = scalar_lea.sflag [#allocation7], 1
    %18 = vsyncpa %s17, 0
    loop: start=0, step=1, limit=4
    $region2: #{tpu_custom_call.1} parent=1 // loop_pre_header
      _
    $region3: #{tpu_custom_call.1} parent=1 // loop_header
      %s20 = sphi 0, %s24
      %p21 = scmp.ge.s32.totalorder %s20, 4
      %s27 = sphi 0, %s39
      %s28 = sphi 0, %s35
      %s29 = sphi 0, %s27
      %s30 = sphi 0, %s28
      %s31 = sphi 0, %s29
      %s32 = sphi 0, %s30
      %s44 = sphi 0, %s46
      %s47 = sphi 0, %s44
      %s48 = sphi 0, %s47
      %s64 = sphi 0, %s48
      %s68 = sphi 0, %s68
      %s70 = sphi 0, %s68
      %s71 = sphi 0, %s70
      %s85 = sphi 0, %s71
      %s89 = sphi 0, %s89
      %s91 = sphi 0, %s89
      %s92 = sphi 0, %s91
      %s106 = sphi 0, %s92
      %s110 = sphi 0, %s110
      %s112 = sphi 0, %s110
      %s113 = sphi 0, %s112
      %s127 = sphi 0, %s113
      %s131 = sphi 0, %s131
      %s133 = sphi 0, %s131
      %s134 = sphi 0, %s133
      %s148 = sphi 0, %s134
      %s156 = sphi 0, %s158
      %s159 = sphi 0, %s156
      %s160 = sphi 0, %s159
      %s176 = sphi 0, %s160
      %s184 = sphi 0, %s186
      %s187 = sphi 0, %s184
      %s188 = sphi 0, %s187
      %s204 = sphi 0, %s188
    $region4: #{tpu_custom_call.1} parent=1 // loop_header_branch
      %23 = sbr.rel (%p21) target = $region8
    $region5: #{tpu_custom_call.1} parent=1 // loop_body
      %s25 = ssub.s32 %s20, 1
      %s26 = ssub.s32 %s20, 2
      %s33 = sadd.s32 1, %s28
      %p34 = scmp.ge.s32.totalorder %s33, 1
      %s35 = scalar_select %p34, 0, %s33
      %s36 = sadd.s32 1, %s27
      %s37 = scalar_select %p34, %s36, %s27
      %p38 = scmp.ge.s32.totalorder %s37, 2
      %s39 = scalar_select %p38, 0, %s37
      %s40 = ssub.s32 %s27, %s39
      %s41 = ssub.s32 %s28, %s35
      %s42 = sor.u32 %s40, %s41
      %p43 = scmp.eq.s32.totalorder %s42, 0
      %s45 = sadd.s32 %s44, 1
      %s46 = scalar_select %p43, %s44, %s45
      %p49 = pneg %p43
      %p50 = scmp.eq.s32.totalorder %s20, 1
      %p51 = por %p49, %p50
      %p52 = scmp.ne.s32.totalorder %s44, %s47
      %p53 = scmp.eq.s32.totalorder %s20, 0
      %p54 = por %p52, %p53
      %p55 = scmp.ne.s32.totalorder %s44, %s47
      %p56 = scmp.eq.s32.totalorder %s25, 1
      %p57 = por %p55, %p56
      %p58 = scmp.ne.s32.totalorder %s47, %s48
      %p59 = scmp.eq.s32.totalorder %s25, 0
      %p60 = por %p58, %p59
      %p61 = scmp.ne.s32.totalorder %s47, %s48
      %p62 = scmp.eq.s32.totalorder %s26, 1
      %p63 = por %p61, %p62
      %p65 = scmp.ne.s32.totalorder %s48, %s64
      %p66 = scmp.eq.s32.totalorder %s26, 0
      %p67 = por %p65, %p66
      %s69 = sadd.s32 %s68, 1
      %p72 = scmp.eq.s32.totalorder %s20, 1
      %p73 = scmp.ne.s32.totalorder %s68, %s70
      %p74 = scmp.eq.s32.totalorder %s20, 0
      %p75 = por %p73, %p74
      %p76 = scmp.ne.s32.totalorder %s68, %s70
      %p77 = scmp.eq.s32.totalorder %s25, 1
      %p78 = por %p76, %p77
      %p79 = scmp.ne.s32.totalorder %s70, %s71
      %p80 = scmp.eq.s32.totalorder %s25, 0
      %p81 = por %p79, %p80
      %p82 = scmp.ne.s32.totalorder %s70, %s71
      %p83 = scmp.eq.s32.totalorder %s26, 1
      %p84 = por %p82, %p83
      %p86 = scmp.ne.s32.totalorder %s71, %s85
      %p87 = scmp.eq.s32.totalorder %s26, 0
      %p88 = por %p86, %p87
      %s90 = sadd.s32 %s89, 1
      %p93 = scmp.eq.s32.totalorder %s20, 1
      %p94 = scmp.ne.s32.totalorder %s89, %s91
      %p95 = scmp.eq.s32.totalorder %s20, 0
      %p96 = por %p94, %p95
      %p97 = scmp.ne.s32.totalorder %s89, %s91
      %p98 = scmp.eq.s32.totalorder %s25, 1
      %p99 = por %p97, %p98
      %p100 = scmp.ne.s32.totalorder %s91, %s92
      %p101 = scmp.eq.s32.totalorder %s25, 0
      %p102 = por %p100, %p101
      %p103 = scmp.ne.s32.totalorder %s91, %s92
      %p104 = scmp.eq.s32.totalorder %s26, 1
      %p105 = por %p103, %p104
      %p107 = scmp.ne.s32.totalorder %s92, %s106
      %p108 = scmp.eq.s32.totalorder %s26, 0
      %p109 = por %p107, %p108
      %s111 = sadd.s32 %s110, 1
      %p114 = scmp.eq.s32.totalorder %s20, 1
      %p115 = scmp.ne.s32.totalorder %s110, %s112
      %p116 = scmp.eq.s32.totalorder %s20, 0
      %p117 = por %p115, %p116
      %p118 = scmp.ne.s32.totalorder %s110, %s112
      %p119 = scmp.eq.s32.totalorder %s25, 1
      %p120 = por %p118, %p119
      %p121 = scmp.ne.s32.totalorder %s112, %s113
      %p122 = scmp.eq.s32.totalorder %s25, 0
      %p123 = por %p121, %p122
      %p124 = scmp.ne.s32.totalorder %s112, %s113
      %p125 = scmp.eq.s32.totalorder %s26, 1
      %p126 = por %p124, %p125
      %p128 = scmp.ne.s32.totalorder %s113, %s127
      %p129 = scmp.eq.s32.totalorder %s26, 0
      %p130 = por %p128, %p129
      %s132 = sadd.s32 %s131, 1
      %p135 = scmp.eq.s32.totalorder %s20, 1
      %p136 = scmp.ne.s32.totalorder %s131, %s133
      %p137 = scmp.eq.s32.totalorder %s20, 0
      %p138 = por %p136, %p137
      %p139 = scmp.ne.s32.totalorder %s131, %s133
      %p140 = scmp.eq.s32.totalorder %s25, 1
      %p141 = por %p139, %p140
      %p142 = scmp.ne.s32.totalorder %s133, %s134
      %p143 = scmp.eq.s32.totalorder %s25, 0
      %p144 = por %p142, %p143
      %p145 = scmp.ne.s32.totalorder %s133, %s134
      %p146 = scmp.eq.s32.totalorder %s26, 1
      %p147 = por %p145, %p146
      %p149 = scmp.ne.s32.totalorder %s134, %s148
      %p150 = scmp.eq.s32.totalorder %s26, 0
      %p151 = por %p149, %p150
      %s152 = ssub.s32 %s27, %s39
      %s153 = ssub.s32 %s28, %s35
      %s154 = sor.u32 %s152, %s153
      %p155 = scmp.eq.s32.totalorder %s154, 0
      %s157 = sadd.s32 %s156, 1
      %s158 = scalar_select %p155, %s156, %s157
      %p161 = pneg %p155
      %p162 = scmp.eq.s32.totalorder %s20, 1
      %p163 = por %p161, %p162
      %p164 = scmp.ne.s32.totalorder %s156, %s159
      %p165 = scmp.eq.s32.totalorder %s20, 0
      %p166 = por %p164, %p165
      %p167 = scmp.ne.s32.totalorder %s156, %s159
      %p168 = scmp.eq.s32.totalorder %s25, 1
      %p169 = por %p167, %p168
      %p170 = scmp.ne.s32.totalorder %s159, %s160
      %p171 = scmp.eq.s32.totalorder %s25, 0
      %p172 = por %p170, %p171
      %p173 = scmp.ne.s32.totalorder %s159, %s160
      %p174 = scmp.eq.s32.totalorder %s26, 1
      %p175 = por %p173, %p174
      %p177 = scmp.ne.s32.totalorder %s160, %s176
      %p178 = scmp.eq.s32.totalorder %s26, 0
      %p179 = por %p177, %p178
      %s180 = ssub.s32 %s27, %s39
      %s181 = ssub.s32 %s28, %s35
      %s182 = sor.u32 %s180, %s181
      %p183 = scmp.eq.s32.totalorder %s182, 0
      %s185 = sadd.s32 %s184, 1
      %s186 = scalar_select %p183, %s184, %s185
      %p189 = pneg %p183
      %p190 = scmp.eq.s32.totalorder %s20, 1
      %p191 = por %p189, %p190
      %p192 = scmp.ne.s32.totalorder %s184, %s187
      %p193 = scmp.eq.s32.totalorder %s20, 0
      %p194 = por %p192, %p193
      %p195 = scmp.ne.s32.totalorder %s184, %s187
      %p196 = scmp.eq.s32.totalorder %s25, 1
      %p197 = por %p195, %p196
      %p198 = scmp.ne.s32.totalorder %s187, %s188
      %p199 = scmp.eq.s32.totalorder %s25, 0
      %p200 = por %p198, %p199
      %p201 = scmp.ne.s32.totalorder %s187, %s188
      %p202 = scmp.eq.s32.totalorder %s26, 1
      %p203 = por %p201, %p202
      %p205 = scmp.ne.s32.totalorder %s188, %s204
      %p206 = scmp.eq.s32.totalorder %s26, 0
      %p207 = por %p205, %p206
      %p208 = scmp.le.s32.totalorder 1, %s20
      %p209 = scmp.lt.s32.totalorder %s20, 3
      %p210 = pnand %p208, %p209
      %p211 = pneg %p210
      // Predicated region
      $region9: #{tpu_custom_call.1} parent=5 // pred_check
        _
      $region10: #{tpu_custom_call.1} parent=5 // pred_check_branch
        %213 = sbr.rel (%p210) target = $region12
      $region11: #{tpu_custom_call.1} parent=5 // pred_region
        %s214 = ssub.s32 %s20, 1
        // Predicated region
        $region13: #{tpu_custom_call.1} parent=11 // pred_check
          %p215 = pneg %p81
        $region14: #{tpu_custom_call.1} parent=11 // pred_check_branch
          %217 = sbr.rel (%p215) target = $region16
        $region15: #{tpu_custom_call.1} parent=11 // pred_region
          _
        $region16: #{tpu_custom_call.1} parent=11 // pred_fallthru
          _
        // Predicated region
        $region17: #{tpu_custom_call.1} parent=11 // pred_check
          %p218 = pneg %p102
        $region18: #{tpu_custom_call.1} parent=11 // pred_check_branch
          %220 = sbr.rel (%p218) target = $region20
        $region19: #{tpu_custom_call.1} parent=11 // pred_region
          _
        $region20: #{tpu_custom_call.1} parent=11 // pred_fallthru
          _
        // Predicated region
        $region21: #{tpu_custom_call.1} parent=11 // pred_check
          %p221 = pneg %p123
        $region22: #{tpu_custom_call.1} parent=11 // pred_check_branch
          %223 = sbr.rel (%p221) target = $region24
        $region23: #{tpu_custom_call.1} parent=11 // pred_region
          %225 = vsyncadd [#allocation3], 0
          %s226 = sshll.u32 %s3, 4
          %s227 = int_to_ptr.hbm [resolvable:$true] %s226
          %s228 = sshll.u32 [#allocation2], 4
          %s229 = int_to_ptr.vmem [resolvable:$true] %s228
          %234 = dma.hbm_to_vmem [thread:$0]  %s227, 640, %s229, [#allocation3], 128, 128, 8
        $region24: #{tpu_custom_call.1} parent=11 // pred_fallthru
          _
        // Predicated region
        $region25: #{tpu_custom_call.1} parent=11 // pred_check
          %p235 = pneg %p144
        $region26: #{tpu_custom_call.1} parent=11 // pred_check_branch
          %237 = sbr.rel (%p235) target = $region28
        $region27: #{tpu_custom_call.1} parent=11 // pred_region
          _
        $region28: #{tpu_custom_call.1} parent=11 // pred_fallthru
          _
      $region12: #{tpu_custom_call.1} parent=5 // pred_fallthru
        _
      %p238 = scmp.lt.s32.totalorder %s20, 2
      // Predicated region
      $region29: #{tpu_custom_call.1} parent=5 // pred_check
        %p239 = pneg %p238
      $region30: #{tpu_custom_call.1} parent=5 // pred_check_branch
        %241 = sbr.rel (%p239) target = $region32
      $region31: #{tpu_custom_call.1} parent=5 // pred_region
        // Predicated region
        $region33: #{tpu_custom_call.1} parent=31 // pred_check
          %p242 = pneg %p54
        $region34: #{tpu_custom_call.1} parent=31 // pred_check_branch
          %244 = sbr.rel (%p242) target = $region36
        $region35: #{tpu_custom_call.1} parent=31 // pred_region
          %s245 = smul.u32 3, %s28
          %p246 = scmp.lt.s32.totalorder %s27, 1
          %s247 = scalar_select %p246, %s27, 1
          %p248 = scmp.lt.s32.totalorder %s245, 2
          %s249 = scalar_select %p248, %s245, 2
          %s250 = smul.addr %s247, 12
          %s251 = sadd.s32 %s249, %s250
          %s252 = smul.addr %s251, 8
          %s253 = scalar_lea.vmem %s0, %s252
          %s254 = smul.u32 3, %s28
        $region36: #{tpu_custom_call.1} parent=31 // pred_fallthru
          _
      $region32: #{tpu_custom_call.1} parent=5 // pred_fallthru
        _
      %p255 = scmp.le.s32.totalorder 1, %s20
      %p256 = scmp.lt.s32.totalorder %s20, 3
      %p257 = pnand %p255, %p256
      %p258 = pneg %p257
      // Predicated region
      $region37: #{tpu_custom_call.1} parent=5 // pred_check
        _
      $region38: #{tpu_custom_call.1} parent=5 // pred_check_branch
        %260 = sbr.rel (%p257) target = $region40
      $region39: #{tpu_custom_call.1} parent=5 // pred_region
        %s261 = ssub.s32 %s20, 1
        // Predicated region
        $region41: #{tpu_custom_call.1} parent=39 // pred_check
          %p262 = pneg %p123
        $region42: #{tpu_custom_call.1} parent=39 // pred_check_branch
          %264 = sbr.rel (%p262) target = $region44
        $region43: #{tpu_custom_call.1} parent=39 // pred_region
          %266 = dma.done [#allocation3], 640
        $region44: #{tpu_custom_call.1} parent=39 // pred_fallthru
          _
        %s267 = smul.u32 3, %s30
        %p268 = scmp.lt.s32.totalorder %s29, 1
        %s269 = scalar_select %p268, %s29, 1
        %p270 = scmp.lt.s32.totalorder %s267, 2
        %s271 = scalar_select %p270, %s267, 2
        %s272 = smul.addr %s269, 12
        %s273 = sadd.s32 %s271, %s272
        %s274 = smul.addr %s273, 8
        %s275 = scalar_lea.vmem %s0, %s274
        %p276 = pneg %p60
        %p277 = pneg %p57
        %p278 = pneg %p81
        %p279 = pneg %p78
        %p280 = pneg %p102
        %p281 = pneg %p99
        %p282 = pneg %p123
        %p283 = pneg %p120
        %p284 = pneg %p144
        %p285 = pneg %p141
        %p286 = pneg %p172
        %p287 = pneg %p169
        %s288 = sand.u32 %s159, 1
        %s289 = scalar_lea.sflag [#allocation4], %s288
        %s290 = sand.u32 %s159, 1
        %s291 = smul.addr %s290, 3
        %s292 = scalar_lea.vmem [#allocation5], %s291
        %p293 = pneg %p200
        %p294 = pneg %p197
        %s295 = sand.u32 %s187, 1
        %s296 = scalar_lea.sflag [#allocation7], %s295
        %s297 = sand.u32 %s187, 1
        %s298 = smul.addr %s297, 96
        %s299 = scalar_lea.vmem [#allocation6], %s298
        %s300 = smul.u32 3, %s30
        %p301 = scmp.lt.s32.totalorder %s29, 1
        %s302 = scalar_select %p301, %s29, 1
        %p303 = scmp.lt.s32.totalorder %s300, 2
        %s304 = scalar_select %p303, %s300, 2
        %s305 = smul.addr %s302, 12
        %s306 = sadd.s32 %s304, %s305
        %s307 = smul.addr %s306, 8
        %s308 = scalar_lea.vmem %s0, %s307
        %s309 = smul.u32 3, %s30
        %s310 = smul.u32 3, %s30
        %s311 = smul.u32 3, %s30
        %v312 = vld [vmem:[%s308] sm:$0xff]
        %v313 = vld [vmem:[%s308 + $0x8] sm:$0xff]
        %v314 = vld [vmem:[%s308 + $0x10] sm:$0xff]
        %v315 = vld [vmem:[%s308 + $0x18] sm:$0xff]
        %v316 = vld [vmem:[%s308 + $0x20] sm:$0xff]
        %v317 = vld [vmem:[%s308 + $0x28] sm:$0xff]
        %v318 = vld [vmem:[%s308 + $0x30] sm:$0xff]
        %v319 = vld [vmem:[%s308 + $0x38] sm:$0xff]
        %v320 = vld [vmem:[%s308 + $0x40] sm:$0xff]
        %v321 = vld [vmem:[%s308 + $0x48] sm:$0xff]
        %v322 = vld [vmem:[%s308 + $0x50] sm:$0xff]
        %v323 = vld [vmem:[%s308 + $0x58] sm:$0xff]
        %v324 = vld [vmem:[%s1] sm:$0xff]
        %v325 = vld [vmem:[%s1 + $0x8] sm:$0xff]
        %v326 = vld [vmem:[%s1 + $0x10] sm:$0xff]
        %v327 = vld [vmem:[%s1 + $0x18] sm:$0xff]
        %v328 = vld [vmem:[%s1 + $0x20] sm:$0xff]
        %v329 = vld [vmem:[%s1 + $0x28] sm:$0xff]
        %v330 = vld [vmem:[%s1 + $0x30] sm:$0xff]
        %v331 = vld [vmem:[%s1 + $0x38] sm:$0xff]
        %v332 = vld [vmem:[%s2] sm:$0xff]
        %v333 = vld [vmem:[%s2 + $0x8] sm:$0xff]
        %v334 = vld [vmem:[%s2 + $0x10] sm:$0xff]
        %v335 = vld [vmem:[%s2 + $0x18] sm:$0xff]
        %v336 = vld [vmem:[%s2 + $0x20] sm:$0xff]
        %v337 = vld [vmem:[%s2 + $0x28] sm:$0xff]
        %v338 = vld [vmem:[%s2 + $0x30] sm:$0xff]
        %v339 = vld [vmem:[%s2 + $0x38] sm:$0xff]
        %341 = vset.pattern.permute.xlu0 0
        %342 = vperm.xlu0 %341, %v332
        %v343 = vpop.permute.xlu0 %342
        %346 = vset.pattern.permute.xlu0 0
        %347 = vperm.xlu0 %346, %v333
        %v348 = vpop.permute.xlu0 %347
        %351 = vset.pattern.permute.xlu0 0
        %352 = vperm.xlu0 %351, %v334
        %v353 = vpop.permute.xlu0 %352
        %356 = vset.pattern.permute.xlu0 0
        %357 = vperm.xlu0 %356, %v335
        %v358 = vpop.permute.xlu0 %357
        %361 = vset.pattern.permute.xlu0 0
        %362 = vperm.xlu0 %361, %v336
        %v363 = vpop.permute.xlu0 %362
        %366 = vset.pattern.permute.xlu0 0
        %367 = vperm.xlu0 %366, %v337
        %v368 = vpop.permute.xlu0 %367
        %371 = vset.pattern.permute.xlu0 0
        %372 = vperm.xlu0 %371, %v338
        %v373 = vpop.permute.xlu0 %372
        %376 = vset.pattern.permute.xlu0 0
        %377 = vperm.xlu0 %376, %v339
        %v378 = vpop.permute.xlu0 %377
        %vm380 = vcmask 261120
        %v382 = vsel %vm380, %v324, 0
        %v385 = vsel %vm380, %v325, 0
        %v388 = vsel %vm380, %v326, 0
        %v391 = vsel %vm380, %v327, 0
        %v394 = vsel %vm380, %v328, 0
        %v397 = vsel %vm380, %v329, 0
        %v400 = vsel %vm380, %v330, 0
        %v403 = vsel %vm380, %v331, 0
        %405 = vmatpush.msra.mxu0 0.0
        %406 = vmatpush.msra.mxu0 0.0
        %407 = vmatpush.msra.mxu0 0.0
        %408 = vmatpush.msra.mxu0 0.0
        %409 = vmatpush.msra.mxu0 0.0
        %410 = vmatpush.msra.mxu0 0.0
        %411 = vmatpush.msra.mxu0 0.0
        %412 = vmatpush.msra.mxu0 0.0
        %413 = vmatpush.msra.mxu0 0.0
        %414 = vmatpush.msra.mxu0 0.0
        %415 = vmatpush.msra.mxu0 0.0
        %416 = vmatpush.msra.mxu0 0.0
        %417 = vmatpush.msra.mxu0 %v321
        %418 = vmatpush.msra.mxu0 %v318
        %419 = vmatpush.msra.mxu0 %v315
        %420 = vmatpush.msra.mxu0 %v312
        %421 = vmatmul.f32.gmra.mxu0 %v382
        %v422 = vpop.f32.mrf.mxu0
        %v423 = vadd.f32 %v343, %v422
        %424 = vmatmul.f32.gmra.mxu0 %v385
        %v425 = vpop.f32.mrf.mxu0
        %v426 = vadd.f32 %v348, %v425
        %427 = vmatmul.f32.gmra.mxu0 %v388
        %v428 = vpop.f32.mrf.mxu0
        %v429 = vadd.f32 %v353, %v428
        %430 = vmatmul.f32.gmra.mxu0 %v391
        %v431 = vpop.f32.mrf.mxu0
        %v432 = vadd.f32 %v358, %v431
        %433 = vmatmul.f32.gmra.mxu0 %v394
        %v434 = vpop.f32.mrf.mxu0
        %v435 = vadd.f32 %v363, %v434
        %436 = vmatmul.f32.gmra.mxu0 %v397
        %v437 = vpop.f32.mrf.mxu0
        %v438 = vadd.f32 %v368, %v437
        %439 = vmatmul.f32.gmra.mxu0 %v400
        %v440 = vpop.f32.mrf.mxu0
        %v441 = vadd.f32 %v373, %v440
        %442 = vmatmul.f32.gmra.mxu0 %v403
        %v443 = vpop.f32.mrf.mxu0
        %v444 = vadd.f32 %v378, %v443
        %445 = vdwg.mxu0
        %446 = vmatpush.msra.mxu0 0.0
        %447 = vmatpush.msra.mxu0 0.0
        %448 = vmatpush.msra.mxu0 0.0
        %449 = vmatpush.msra.mxu0 0.0
        %450 = vmatpush.msra.mxu0 0.0
        %451 = vmatpush.msra.mxu0 0.0
        %452 = vmatpush.msra.mxu0 0.0
        %453 = vmatpush.msra.mxu0 0.0
        %454 = vmatpush.msra.mxu0 0.0
        %455 = vmatpush.msra.mxu0 0.0
        %456 = vmatpush.msra.mxu0 0.0
        %457 = vmatpush.msra.mxu0 0.0
        %458 = vmatpush.msra.mxu0 %v322
        %459 = vmatpush.msra.mxu0 %v319
        %460 = vmatpush.msra.mxu0 %v316
        %461 = vmatpush.msra.mxu0 %v313
        %462 = vmatmul.f32.gmra.mxu0 %v382
        %v463 = vpop.f32.mrf.mxu0
        %v464 = vadd.f32 %v343, %v463
        %465 = vmatmul.f32.gmra.mxu0 %v385
        %v466 = vpop.f32.mrf.mxu0
        %v467 = vadd.f32 %v348, %v466
        %468 = vmatmul.f32.gmra.mxu0 %v388
        %v469 = vpop.f32.mrf.mxu0
        %v470 = vadd.f32 %v353, %v469
        %471 = vmatmul.f32.gmra.mxu0 %v391
        %v472 = vpop.f32.mrf.mxu0
        %v473 = vadd.f32 %v358, %v472
        %474 = vmatmul.f32.gmra.mxu0 %v394
        %v475 = vpop.f32.mrf.mxu0
        %v476 = vadd.f32 %v363, %v475
        %477 = vmatmul.f32.gmra.mxu0 %v397
        %v478 = vpop.f32.mrf.mxu0
        %v479 = vadd.f32 %v368, %v478
        %480 = vmatmul.f32.gmra.mxu0 %v400
        %v481 = vpop.f32.mrf.mxu0
        %v482 = vadd.f32 %v373, %v481
        %483 = vmatmul.f32.gmra.mxu0 %v403
        %v484 = vpop.f32.mrf.mxu0
        %v485 = vadd.f32 %v378, %v484
        %486 = vdwg.mxu0
        %487 = vmatpush.msra.mxu0 0.0
        %488 = vmatpush.msra.mxu0 0.0
        %489 = vmatpush.msra.mxu0 0.0
        %490 = vmatpush.msra.mxu0 0.0
        %491 = vmatpush.msra.mxu0 0.0
        %492 = vmatpush.msra.mxu0 0.0
        %493 = vmatpush.msra.mxu0 0.0
        %494 = vmatpush.msra.mxu0 0.0
        %495 = vmatpush.msra.mxu0 0.0
        %496 = vmatpush.msra.mxu0 0.0
        %497 = vmatpush.msra.mxu0 0.0
        %498 = vmatpush.msra.mxu0 0.0
        %499 = vmatpush.msra.mxu0 %v323
        %500 = vmatpush.msra.mxu0 %v320
        %501 = vmatpush.msra.mxu0 %v317
        %502 = vmatpush.msra.mxu0 %v314
        %503 = vmatmul.f32.gmra.mxu0 %v382
        %v504 = vpop.f32.mrf.mxu0
        %v505 = vadd.f32 %v343, %v504
        %506 = vmatmul.f32.gmra.mxu0 %v385
        %v507 = vpop.f32.mrf.mxu0
        %v508 = vadd.f32 %v348, %v507
        %509 = vmatmul.f32.gmra.mxu0 %v388
        %v510 = vpop.f32.mrf.mxu0
        %v511 = vadd.f32 %v353, %v510
        %512 = vmatmul.f32.gmra.mxu0 %v391
        %v513 = vpop.f32.mrf.mxu0
        %v514 = vadd.f32 %v358, %v513
        %515 = vmatmul.f32.gmra.mxu0 %v394
        %v516 = vpop.f32.mrf.mxu0
        %v517 = vadd.f32 %v363, %v516
        %518 = vmatmul.f32.gmra.mxu0 %v397
        %v519 = vpop.f32.mrf.mxu0
        %v520 = vadd.f32 %v368, %v519
        %521 = vmatmul.f32.gmra.mxu0 %v400
        %v522 = vpop.f32.mrf.mxu0
        %v523 = vadd.f32 %v373, %v522
        %524 = vmatmul.f32.gmra.mxu0 %v403
        %v525 = vpop.f32.mrf.mxu0
        %v526 = vadd.f32 %v378, %v525
        %527 = vdwg.mxu0
        %v528 = vmax.f32 %v423, 0.0
        %v529 = vmax.f32 %v464, 0.0
        %v530 = vmax.f32 %v505, 0.0
        %v531 = vmax.f32 %v426, 0.0
        %v532 = vmax.f32 %v467, 0.0
        %v533 = vmax.f32 %v508, 0.0
        %v534 = vmax.f32 %v429, 0.0
        %v535 = vmax.f32 %v470, 0.0
        %v536 = vmax.f32 %v511, 0.0
        %v537 = vmax.f32 %v432, 0.0
        %v538 = vmax.f32 %v473, 0.0
        %v539 = vmax.f32 %v514, 0.0
        %v540 = vmax.f32 %v435, 0.0
        %v541 = vmax.f32 %v476, 0.0
        %v542 = vmax.f32 %v517, 0.0
        %v543 = vmax.f32 %v438, 0.0
        %v544 = vmax.f32 %v479, 0.0
        %v545 = vmax.f32 %v520, 0.0
        %v546 = vmax.f32 %v441, 0.0
        %v547 = vmax.f32 %v482, 0.0
        %v548 = vmax.f32 %v523, 0.0
        %v549 = vmax.f32 %v444, 0.0
        %v550 = vmax.f32 %v485, 0.0
        %v551 = vmax.f32 %v526, 0.0
        %vm552 = vcmp.ne.f32.partialorder %v423, %v423
        %vm553 = vcmp.ne.f32.partialorder %v464, %v464
        %vm554 = vcmp.ne.f32.partialorder %v505, %v505
        %vm555 = vcmp.ne.f32.partialorder %v426, %v426
        %vm556 = vcmp.ne.f32.partialorder %v467, %v467
        %vm557 = vcmp.ne.f32.partialorder %v508, %v508
        %vm558 = vcmp.ne.f32.partialorder %v429, %v429
        %vm559 = vcmp.ne.f32.partialorder %v470, %v470
        %vm560 = vcmp.ne.f32.partialorder %v511, %v511
        %vm561 = vcmp.ne.f32.partialorder %v432, %v432
        %vm562 = vcmp.ne.f32.partialorder %v473, %v473
        %vm563 = vcmp.ne.f32.partialorder %v514, %v514
        %vm564 = vcmp.ne.f32.partialorder %v435, %v435
        %vm565 = vcmp.ne.f32.partialorder %v476, %v476
        %vm566 = vcmp.ne.f32.partialorder %v517, %v517
        %vm567 = vcmp.ne.f32.partialorder %v438, %v438
        %vm568 = vcmp.ne.f32.partialorder %v479, %v479
        %vm569 = vcmp.ne.f32.partialorder %v520, %v520
        %vm570 = vcmp.ne.f32.partialorder %v441, %v441
        %vm571 = vcmp.ne.f32.partialorder %v482, %v482
        %vm572 = vcmp.ne.f32.partialorder %v523, %v523
        %vm573 = vcmp.ne.f32.partialorder %v444, %v444
        %vm574 = vcmp.ne.f32.partialorder %v485, %v485
        %vm575 = vcmp.ne.f32.partialorder %v526, %v526
        %v576 = vadd.f32 %v423, 0.0
        %v577 = vadd.f32 %v464, 0.0
        %v578 = vadd.f32 %v505, 0.0
        %v579 = vadd.f32 %v426, 0.0
        %v580 = vadd.f32 %v467, 0.0
        %v581 = vadd.f32 %v508, 0.0
        %v582 = vadd.f32 %v429, 0.0
        %v583 = vadd.f32 %v470, 0.0
        %v584 = vadd.f32 %v511, 0.0
        %v585 = vadd.f32 %v432, 0.0
        %v586 = vadd.f32 %v473, 0.0
        %v587 = vadd.f32 %v514, 0.0
        %v588 = vadd.f32 %v435, 0.0
        %v589 = vadd.f32 %v476, 0.0
        %v590 = vadd.f32 %v517, 0.0
        %v591 = vadd.f32 %v438, 0.0
        %v592 = vadd.f32 %v479, 0.0
        %v593 = vadd.f32 %v520, 0.0
        %v594 = vadd.f32 %v441, 0.0
        %v595 = vadd.f32 %v482, 0.0
        %v596 = vadd.f32 %v523, 0.0
        %v597 = vadd.f32 %v444, 0.0
        %v598 = vadd.f32 %v485, 0.0
        %v599 = vadd.f32 %v526, 0.0
        %v600 = vand.u32 2147483647, %v423
        %v601 = vand.u32 2147483647, %v464
        %v602 = vand.u32 2147483647, %v505
        %v603 = vand.u32 2147483647, %v426
        %v604 = vand.u32 2147483647, %v467
        %v605 = vand.u32 2147483647, %v508
        %v606 = vand.u32 2147483647, %v429
        %v607 = vand.u32 2147483647, %v470
        %v608 = vand.u32 2147483647, %v511
        %v609 = vand.u32 2147483647, %v432
        %v610 = vand.u32 2147483647, %v473
        %v611 = vand.u32 2147483647, %v514
        %v612 = vand.u32 2147483647, %v435
        %v613 = vand.u32 2147483647, %v476
        %v614 = vand.u32 2147483647, %v517
        %v615 = vand.u32 2147483647, %v438
        %v616 = vand.u32 2147483647, %v479
        %v617 = vand.u32 2147483647, %v520
        %v618 = vand.u32 2147483647, %v441
        %v619 = vand.u32 2147483647, %v482
        %v620 = vand.u32 2147483647, %v523
        %v621 = vand.u32 2147483647, %v444
        %v622 = vand.u32 2147483647, %v485
        %v623 = vand.u32 2147483647, %v526
        %v624 = vsub.f32 0.0, %v600
        %v625 = vsub.f32 0.0, %v601
        %v626 = vsub.f32 0.0, %v602
        %v627 = vsub.f32 0.0, %v603
        %v628 = vsub.f32 0.0, %v604
        %v629 = vsub.f32 0.0, %v605
        %v630 = vsub.f32 0.0, %v606
        %v631 = vsub.f32 0.0, %v607
        %v632 = vsub.f32 0.0, %v608
        %v633 = vsub.f32 0.0, %v609
        %v634 = vsub.f32 0.0, %v610
        %v635 = vsub.f32 0.0, %v611
        %v636 = vsub.f32 0.0, %v612
        %v637 = vsub.f32 0.0, %v613
        %v638 = vsub.f32 0.0, %v614
        %v639 = vsub.f32 0.0, %v615
        %v640 = vsub.f32 0.0, %v616
        %v641 = vsub.f32 0.0, %v617
        %v642 = vsub.f32 0.0, %v618
        %v643 = vsub.f32 0.0, %v619
        %v644 = vsub.f32 0.0, %v620
        %v645 = vsub.f32 0.0, %v621
        %v646 = vsub.f32 0.0, %v622
        %v647 = vsub.f32 0.0, %v623
        %v648 = vmul.f32 %v624, 1.442695
        %v649 = vpow.pop %v648
        %v650 = vmul.f32 %v625, 1.442695
        %v651 = vpow.pop %v650
        %v652 = vmul.f32 %v626, 1.442695
        %v653 = vpow.pop %v652
        %v654 = vmul.f32 %v627, 1.442695
        %v655 = vpow.pop %v654
        %v656 = vmul.f32 %v628, 1.442695
        %v657 = vpow.pop %v656
        %v658 = vmul.f32 %v629, 1.442695
        %v659 = vpow.pop %v658
        %v660 = vmul.f32 %v630, 1.442695
        %v661 = vpow.pop %v660
        %v662 = vmul.f32 %v631, 1.442695
        %v663 = vpow.pop %v662
        %v664 = vmul.f32 %v632, 1.442695
        %v665 = vpow.pop %v664
        %v666 = vmul.f32 %v633, 1.442695
        %v667 = vpow.pop %v666
        %v668 = vmul.f32 %v634, 1.442695
        %v669 = vpow.pop %v668
        %v670 = vmul.f32 %v635, 1.442695
        %v671 = vpow.pop %v670
        %v672 = vmul.f32 %v636, 1.442695
        %v673 = vpow.pop %v672
        %v674 = vmul.f32 %v637, 1.442695
        %v675 = vpow.pop %v674
        %v676 = vmul.f32 %v638, 1.442695
        %v677 = vpow.pop %v676
        %v678 = vmul.f32 %v639, 1.442695
        %v679 = vpow.pop %v678
        %v680 = vmul.f32 %v640, 1.442695
        %v681 = vpow.pop %v680
        %v682 = vmul.f32 %v641, 1.442695
        %v683 = vpow.pop %v682
        %v684 = vmul.f32 %v642, 1.442695
        %v685 = vpow.pop %v684
        %v686 = vmul.f32 %v643, 1.442695
        %v687 = vpow.pop %v686
        %v688 = vmul.f32 %v644, 1.442695
        %v689 = vpow.pop %v688
        %v690 = vmul.f32 %v645, 1.442695
        %v691 = vpow.pop %v690
        %v692 = vmul.f32 %v646, 1.442695
        %v693 = vpow.pop %v692
        %v694 = vmul.f32 %v647, 1.442695
        %v695 = vpow.pop %v694
        %v696 = vadd.f32 %v649, 1.0
        %v697 = vlog2.pop %v696
        %v698 = vmul.f32 %v697, 0.6931472
        %v699 = vmul.f32 -0.5, %v649
        %v700 = vadd.f32 %v699, 1.0
        %v701 = vmul.f32 %v700, %v649
        %v702 = vand.u32 2147483647, %v649
        %vm703 = vcmp.lt.f32.partialorder %v702, 0.0004427343
        %v704 = vsel %vm703, %v701, %v698
        %v705 = vadd.f32 %v651, 1.0
        %v706 = vlog2.pop %v705
        %v707 = vmul.f32 %v706, 0.6931472
        %v708 = vmul.f32 -0.5, %v651
        %v709 = vadd.f32 %v708, 1.0
        %v710 = vmul.f32 %v709, %v651
        %v711 = vand.u32 2147483647, %v651
        %vm712 = vcmp.lt.f32.partialorder %v711, 0.0004427343
        %v713 = vsel %vm712, %v710, %v707
        %v714 = vadd.f32 %v653, 1.0
        %v715 = vlog2.pop %v714
        %v716 = vmul.f32 %v715, 0.6931472
        %v717 = vmul.f32 -0.5, %v653
        %v718 = vadd.f32 %v717, 1.0
        %v719 = vmul.f32 %v718, %v653
        %v720 = vand.u32 2147483647, %v653
        %vm721 = vcmp.lt.f32.partialorder %v720, 0.0004427343
        %v722 = vsel %vm721, %v719, %v716
        %v723 = vadd.f32 %v655, 1.0
        %v724 = vlog2.pop %v723
        %v725 = vmul.f32 %v724, 0.6931472
        %v726 = vmul.f32 -0.5, %v655
        %v727 = vadd.f32 %v726, 1.0
        %v728 = vmul.f32 %v727, %v655
        %v729 = vand.u32 2147483647, %v655
        %vm730 = vcmp.lt.f32.partialorder %v729, 0.0004427343
        %v731 = vsel %vm730, %v728, %v725
        %v732 = vadd.f32 %v657, 1.0
        %v733 = vlog2.pop %v732
        %v734 = vmul.f32 %v733, 0.6931472
        %v735 = vmul.f32 -0.5, %v657
        %v736 = vadd.f32 %v735, 1.0
        %v737 = vmul.f32 %v736, %v657
        %v738 = vand.u32 2147483647, %v657
        %vm739 = vcmp.lt.f32.partialorder %v738, 0.0004427343
        %v740 = vsel %vm739, %v737, %v734
        %v741 = vadd.f32 %v659, 1.0
        %v742 = vlog2.pop %v741
        %v743 = vmul.f32 %v742, 0.6931472
        %v744 = vmul.f32 -0.5, %v659
        %v745 = vadd.f32 %v744, 1.0
        %v746 = vmul.f32 %v745, %v659
        %v747 = vand.u32 2147483647, %v659
        %vm748 = vcmp.lt.f32.partialorder %v747, 0.0004427343
        %v749 = vsel %vm748, %v746, %v743
        %v750 = vadd.f32 %v661, 1.0
        %v751 = vlog2.pop %v750
        %v752 = vmul.f32 %v751, 0.6931472
        %v753 = vmul.f32 -0.5, %v661
        %v754 = vadd.f32 %v753, 1.0
        %v755 = vmul.f32 %v754, %v661
        %v756 = vand.u32 2147483647, %v661
        %vm757 = vcmp.lt.f32.partialorder %v756, 0.0004427343
        %v758 = vsel %vm757, %v755, %v752
        %v759 = vadd.f32 %v663, 1.0
        %v760 = vlog2.pop %v759
        %v761 = vmul.f32 %v760, 0.6931472
        %v762 = vmul.f32 -0.5, %v663
        %v763 = vadd.f32 %v762, 1.0
        %v764 = vmul.f32 %v763, %v663
        %v765 = vand.u32 2147483647, %v663
        %vm766 = vcmp.lt.f32.partialorder %v765, 0.0004427343
        %v767 = vsel %vm766, %v764, %v761
        %v768 = vadd.f32 %v665, 1.0
        %v769 = vlog2.pop %v768
        %v770 = vmul.f32 %v769, 0.6931472
        %v771 = vmul.f32 -0.5, %v665
        %v772 = vadd.f32 %v771, 1.0
        %v773 = vmul.f32 %v772, %v665
        %v774 = vand.u32 2147483647, %v665
        %vm775 = vcmp.lt.f32.partialorder %v774, 0.0004427343
        %v776 = vsel %vm775, %v773, %v770
        %v777 = vadd.f32 %v667, 1.0
        %v778 = vlog2.pop %v777
        %v779 = vmul.f32 %v778, 0.6931472
        %v780 = vmul.f32 -0.5, %v667
        %v781 = vadd.f32 %v780, 1.0
        %v782 = vmul.f32 %v781, %v667
        %v783 = vand.u32 2147483647, %v667
        %vm784 = vcmp.lt.f32.partialorder %v783, 0.0004427343
        %v785 = vsel %vm784, %v782, %v779
        %v786 = vadd.f32 %v669, 1.0
        %v787 = vlog2.pop %v786
        %v788 = vmul.f32 %v787, 0.6931472
        %v789 = vmul.f32 -0.5, %v669
        %v790 = vadd.f32 %v789, 1.0
        %v791 = vmul.f32 %v790, %v669
        %v792 = vand.u32 2147483647, %v669
        %vm793 = vcmp.lt.f32.partialorder %v792, 0.0004427343
        %v794 = vsel %vm793, %v791, %v788
        %v795 = vadd.f32 %v671, 1.0
        %v796 = vlog2.pop %v795
        %v797 = vmul.f32 %v796, 0.6931472
        %v798 = vmul.f32 -0.5, %v671
        %v799 = vadd.f32 %v798, 1.0
        %v800 = vmul.f32 %v799, %v671
        %v801 = vand.u32 2147483647, %v671
        %vm802 = vcmp.lt.f32.partialorder %v801, 0.0004427343
        %v803 = vsel %vm802, %v800, %v797
        %v804 = vadd.f32 %v673, 1.0
        %v805 = vlog2.pop %v804
        %v806 = vmul.f32 %v805, 0.6931472
        %v807 = vmul.f32 -0.5, %v673
        %v808 = vadd.f32 %v807, 1.0
        %v809 = vmul.f32 %v808, %v673
        %v810 = vand.u32 2147483647, %v673
        %vm811 = vcmp.lt.f32.partialorder %v810, 0.0004427343
        %v812 = vsel %vm811, %v809, %v806
        %v813 = vadd.f32 %v675, 1.0
        %v814 = vlog2.pop %v813
        %v815 = vmul.f32 %v814, 0.6931472
        %v816 = vmul.f32 -0.5, %v675
        %v817 = vadd.f32 %v816, 1.0
        %v818 = vmul.f32 %v817, %v675
        %v819 = vand.u32 2147483647, %v675
        %vm820 = vcmp.lt.f32.partialorder %v819, 0.0004427343
        %v821 = vsel %vm820, %v818, %v815
        %v822 = vadd.f32 %v677, 1.0
        %v823 = vlog2.pop %v822
        %v824 = vmul.f32 %v823, 0.6931472
        %v825 = vmul.f32 -0.5, %v677
        %v826 = vadd.f32 %v825, 1.0
        %v827 = vmul.f32 %v826, %v677
        %v828 = vand.u32 2147483647, %v677
        %vm829 = vcmp.lt.f32.partialorder %v828, 0.0004427343
        %v830 = vsel %vm829, %v827, %v824
        %v831 = vadd.f32 %v679, 1.0
        %v832 = vlog2.pop %v831
        %v833 = vmul.f32 %v832, 0.6931472
        %v834 = vmul.f32 -0.5, %v679
        %v835 = vadd.f32 %v834, 1.0
        %v836 = vmul.f32 %v835, %v679
        %v837 = vand.u32 2147483647, %v679
        %vm838 = vcmp.lt.f32.partialorder %v837, 0.0004427343
        %v839 = vsel %vm838, %v836, %v833
        %v840 = vadd.f32 %v681, 1.0
        %v841 = vlog2.pop %v840
        %v842 = vmul.f32 %v841, 0.6931472
        %v843 = vmul.f32 -0.5, %v681
        %v844 = vadd.f32 %v843, 1.0
        %v845 = vmul.f32 %v844, %v681
        %v846 = vand.u32 2147483647, %v681
        %vm847 = vcmp.lt.f32.partialorder %v846, 0.0004427343
        %v848 = vsel %vm847, %v845, %v842
        %v849 = vadd.f32 %v683, 1.0
        %v850 = vlog2.pop %v849
        %v851 = vmul.f32 %v850, 0.6931472
        %v852 = vmul.f32 -0.5, %v683
        %v853 = vadd.f32 %v852, 1.0
        %v854 = vmul.f32 %v853, %v683
        %v855 = vand.u32 2147483647, %v683
        %vm856 = vcmp.lt.f32.partialorder %v855, 0.0004427343
        %v857 = vsel %vm856, %v854, %v851
        %v858 = vadd.f32 %v685, 1.0
        %v859 = vlog2.pop %v858
        %v860 = vmul.f32 %v859, 0.6931472
        %v861 = vmul.f32 -0.5, %v685
        %v862 = vadd.f32 %v861, 1.0
        %v863 = vmul.f32 %v862, %v685
        %v864 = vand.u32 2147483647, %v685
        %vm865 = vcmp.lt.f32.partialorder %v864, 0.0004427343
        %v866 = vsel %vm865, %v863, %v860
        %v867 = vadd.f32 %v687, 1.0
        %v868 = vlog2.pop %v867
        %v869 = vmul.f32 %v868, 0.6931472
        %v870 = vmul.f32 -0.5, %v687
        %v871 = vadd.f32 %v870, 1.0
        %v872 = vmul.f32 %v871, %v687
        %v873 = vand.u32 2147483647, %v687
        %vm874 = vcmp.lt.f32.partialorder %v873, 0.0004427343
        %v875 = vsel %vm874, %v872, %v869
        %v876 = vadd.f32 %v689, 1.0
        %v877 = vlog2.pop %v876
        %v878 = vmul.f32 %v877, 0.6931472
        %v879 = vmul.f32 -0.5, %v689
        %v880 = vadd.f32 %v879, 1.0
        %v881 = vmul.f32 %v880, %v689
        %v882 = vand.u32 2147483647, %v689
        %vm883 = vcmp.lt.f32.partialorder %v882, 0.0004427343
        %v884 = vsel %vm883, %v881, %v878
        %v885 = vadd.f32 %v691, 1.0
        %v886 = vlog2.pop %v885
        %v887 = vmul.f32 %v886, 0.6931472
        %v888 = vmul.f32 -0.5, %v691
        %v889 = vadd.f32 %v888, 1.0
        %v890 = vmul.f32 %v889, %v691
        %v891 = vand.u32 2147483647, %v691
        %vm892 = vcmp.lt.f32.partialorder %v891, 0.0004427343
        %v893 = vsel %vm892, %v890, %v887
        %v894 = vadd.f32 %v693, 1.0
        %v895 = vlog2.pop %v894
        %v896 = vmul.f32 %v895, 0.6931472
        %v897 = vmul.f32 -0.5, %v693
        %v898 = vadd.f32 %v897, 1.0
        %v899 = vmul.f32 %v898, %v693
        %v900 = vand.u32 2147483647, %v693
        %vm901 = vcmp.lt.f32.partialorder %v900, 0.0004427343
        %v902 = vsel %vm901, %v899, %v896
        %v903 = vadd.f32 %v695, 1.0
        %v904 = vlog2.pop %v903
        %v905 = vmul.f32 %v904, 0.6931472
        %v906 = vmul.f32 -0.5, %v695
        %v907 = vadd.f32 %v906, 1.0
        %v908 = vmul.f32 %v907, %v695
        %v909 = vand.u32 2147483647, %v695
        %vm910 = vcmp.lt.f32.partialorder %v909, 0.0004427343
        %v911 = vsel %vm910, %v908, %v905
        %v912 = vadd.f32 %v528, %v704
        %v913 = vadd.f32 %v529, %v713
        %v914 = vadd.f32 %v530, %v722
        %v915 = vadd.f32 %v531, %v731
        %v916 = vadd.f32 %v532, %v740
        %v917 = vadd.f32 %v533, %v749
        %v918 = vadd.f32 %v534, %v758
        %v919 = vadd.f32 %v535, %v767
        %v920 = vadd.f32 %v536, %v776
        %v921 = vadd.f32 %v537, %v785
        %v922 = vadd.f32 %v538, %v794
        %v923 = vadd.f32 %v539, %v803
        %v924 = vadd.f32 %v540, %v812
        %v925 = vadd.f32 %v541, %v821
        %v926 = vadd.f32 %v542, %v830
        %v927 = vadd.f32 %v543, %v839
        %v928 = vadd.f32 %v544, %v848
        %v929 = vadd.f32 %v545, %v857
        %v930 = vadd.f32 %v546, %v866
        %v931 = vadd.f32 %v547, %v875
        %v932 = vadd.f32 %v548, %v884
        %v933 = vadd.f32 %v549, %v893
        %v934 = vadd.f32 %v550, %v902
        %v935 = vadd.f32 %v551, %v911
        %v936 = vsel %vm552, %v576, %v912
        %v937 = vsel %vm553, %v577, %v913
        %v938 = vsel %vm554, %v578, %v914
        %v939 = vsel %vm555, %v579, %v915
        %v940 = vsel %vm556, %v580, %v916
        %v941 = vsel %vm557, %v581, %v917
        %v942 = vsel %vm558, %v582, %v918
        %v943 = vsel %vm559, %v583, %v919
        %v944 = vsel %vm560, %v584, %v920
        %v945 = vsel %vm561, %v585, %v921
        %v946 = vsel %vm562, %v586, %v922
        %v947 = vsel %vm563, %v587, %v923
        %v948 = vsel %vm564, %v588, %v924
        %v949 = vsel %vm565, %v589, %v925
        %v950 = vsel %vm566, %v590, %v926
        %v951 = vsel %vm567, %v591, %v927
        %v952 = vsel %vm568, %v592, %v928
        %v953 = vsel %vm569, %v593, %v929
        %v954 = vsel %vm570, %v594, %v930
        %v955 = vsel %vm571, %v595, %v931
        %v956 = vsel %vm572, %v596, %v932
        %v957 = vsel %vm573, %v597, %v933
        %v958 = vsel %vm574, %v598, %v934
        %v959 = vsel %vm575, %v599, %v935
        %v960 = vld [vmem:[#allocation2] sm:$0xff]
        %v961 = vld [vmem:[#allocation2 + $0x8] sm:$0xff]
        %v962 = vld [vmem:[#allocation2 + $0x10] sm:$0xff]
        %v963 = vld [vmem:[#allocation2 + $0x18] sm:$0xff]
        %v964 = vld [vmem:[#allocation2 + $0x20] sm:$0x1]
        %v965 = vld [vmem:[%s4] sm:$0xff]
        %v966 = vld [vmem:[%s4 + $0x8] sm:$0xff]
        %v967 = vld [vmem:[%s4 + $0x10] sm:$0xff]
        %v968 = vld [vmem:[%s4 + $0x18] sm:$0xff]
        %v969 = vld [vmem:[%s4 + $0x20] sm:$0x1]
        %971 = vset.pattern.permute.xlu0 0
        %972 = vperm.xlu0 %971, %v965
        %v973 = vpop.permute.xlu0 %972
        %976 = vset.pattern.permute.xlu0 0
        %977 = vperm.xlu0 %976, %v966
        %v978 = vpop.permute.xlu0 %977
        %981 = vset.pattern.permute.xlu0 0
        %982 = vperm.xlu0 %981, %v967
        %v983 = vpop.permute.xlu0 %982
        %986 = vset.pattern.permute.xlu0 0
        %987 = vperm.xlu0 %986, %v968
        %v988 = vpop.permute.xlu0 %987
        %991 = vset.pattern.permute.xlu0 0
        %992 = vperm.xlu0 %991, %v969
        %v993 = vpop.permute.xlu0 %992
        %vm995 = vcmask 523264
        %v997 = vsel %vm995, %v960, 0
        %v1000 = vsel %vm995, %v961, 0
        %v1003 = vsel %vm995, %v962, 0
        %v1006 = vsel %vm995, %v963, 0
        %v1009 = vsel %vm995, %v964, 0
        %1011 = vmatpush.msra.mxu0 0.0
        %1012 = vmatpush.msra.mxu0 0.0
        %1013 = vmatpush.msra.mxu0 0.0
        %1014 = vmatpush.msra.mxu0 0.0
        %1015 = vmatpush.msra.mxu0 0.0
        %1016 = vmatpush.msra.mxu0 0.0
        %1017 = vmatpush.msra.mxu0 0.0
        %1018 = vmatpush.msra.mxu0 0.0
        %1019 = vmatpush.msra.mxu0 %v957
        %1020 = vmatpush.msra.mxu0 %v954
        %1021 = vmatpush.msra.mxu0 %v951
        %1022 = vmatpush.msra.mxu0 %v948
        %1023 = vmatpush.msra.mxu0 %v945
        %1024 = vmatpush.msra.mxu0 %v942
        %1025 = vmatpush.msra.mxu0 %v939
        %1026 = vmatpush.msra.mxu0 %v936
        %1027 = vmatmul.f32.gmra.mxu0 %v997
        %v1028 = vpop.f32.mrf.mxu0
        %v1029 = vadd.f32 %v973, %v1028
        %1030 = vmatmul.f32.gmra.mxu0 %v1000
        %v1031 = vpop.f32.mrf.mxu0
        %v1032 = vadd.f32 %v978, %v1031
        %1033 = vmatmul.f32.gmra.mxu0 %v1003
        %v1034 = vpop.f32.mrf.mxu0
        %v1035 = vadd.f32 %v983, %v1034
        %1036 = vmatmul.f32.gmra.mxu0 %v1006
        %v1037 = vpop.f32.mrf.mxu0
        %v1038 = vadd.f32 %v988, %v1037
        %1039 = vmatmul.f32.gmra.mxu0 %v1009
        %v1040 = vpop.f32.mrf.mxu0
        %v1041 = vadd.f32 %v993, %v1040
        %1042 = vdwg.mxu0
        %1043 = vmatpush.msra.mxu0 0.0
        %1044 = vmatpush.msra.mxu0 0.0
        %1045 = vmatpush.msra.mxu0 0.0
        %1046 = vmatpush.msra.mxu0 0.0
        %1047 = vmatpush.msra.mxu0 0.0
        %1048 = vmatpush.msra.mxu0 0.0
        %1049 = vmatpush.msra.mxu0 0.0
        %1050 = vmatpush.msra.mxu0 0.0
        %1051 = vmatpush.msra.mxu0 %v958
        %1052 = vmatpush.msra.mxu0 %v955
        %1053 = vmatpush.msra.mxu0 %v952
        %1054 = vmatpush.msra.mxu0 %v949
        %1055 = vmatpush.msra.mxu0 %v946
        %1056 = vmatpush.msra.mxu0 %v943
        %1057 = vmatpush.msra.mxu0 %v940
        %1058 = vmatpush.msra.mxu0 %v937
        %1059 = vmatmul.f32.gmra.mxu0 %v997
        %v1060 = vpop.f32.mrf.mxu0
        %v1061 = vadd.f32 %v973, %v1060
        %1062 = vmatmul.f32.gmra.mxu0 %v1000
        %v1063 = vpop.f32.mrf.mxu0
        %v1064 = vadd.f32 %v978, %v1063
        %1065 = vmatmul.f32.gmra.mxu0 %v1003
        %v1066 = vpop.f32.mrf.mxu0
        %v1067 = vadd.f32 %v983, %v1066
        %1068 = vmatmul.f32.gmra.mxu0 %v1006
        %v1069 = vpop.f32.mrf.mxu0
        %v1070 = vadd.f32 %v988, %v1069
        %1071 = vmatmul.f32.gmra.mxu0 %v1009
        %v1072 = vpop.f32.mrf.mxu0
        %v1073 = vadd.f32 %v993, %v1072
        %1074 = vdwg.mxu0
        %1075 = vmatpush.msra.mxu0 0.0
        %1076 = vmatpush.msra.mxu0 0.0
        %1077 = vmatpush.msra.mxu0 0.0
        %1078 = vmatpush.msra.mxu0 0.0
        %1079 = vmatpush.msra.mxu0 0.0
        %1080 = vmatpush.msra.mxu0 0.0
        %1081 = vmatpush.msra.mxu0 0.0
        %1082 = vmatpush.msra.mxu0 0.0
        %1083 = vmatpush.msra.mxu0 %v959
        %1084 = vmatpush.msra.mxu0 %v956
        %1085 = vmatpush.msra.mxu0 %v953
        %1086 = vmatpush.msra.mxu0 %v950
        %1087 = vmatpush.msra.mxu0 %v947
        %1088 = vmatpush.msra.mxu0 %v944
        %1089 = vmatpush.msra.mxu0 %v941
        %1090 = vmatpush.msra.mxu0 %v938
        %1091 = vmatmul.f32.gmra.mxu0 %v997
        %v1092 = vpop.f32.mrf.mxu0
        %v1093 = vadd.f32 %v973, %v1092
        %1094 = vmatmul.f32.gmra.mxu0 %v1000
        %v1095 = vpop.f32.mrf.mxu0
        %v1096 = vadd.f32 %v978, %v1095
        %1097 = vmatmul.f32.gmra.mxu0 %v1003
        %v1098 = vpop.f32.mrf.mxu0
        %v1099 = vadd.f32 %v983, %v1098
        %1100 = vmatmul.f32.gmra.mxu0 %v1006
        %v1101 = vpop.f32.mrf.mxu0
        %v1102 = vadd.f32 %v988, %v1101
        %1103 = vmatmul.f32.gmra.mxu0 %v1009
        %v1104 = vpop.f32.mrf.mxu0
        %v1105 = vadd.f32 %v993, %v1104
        %1106 = vdwg.mxu0
        %v1107 = vxor.u32 %v1029, 2147483648
        %v1108 = vxor.u32 %v1061, 2147483648
        %v1109 = vxor.u32 %v1093, 2147483648
        %v1110 = vxor.u32 %v1032, 2147483648
        %v1111 = vxor.u32 %v1064, 2147483648
        %v1112 = vxor.u32 %v1096, 2147483648
        %v1113 = vxor.u32 %v1035, 2147483648
        %v1114 = vxor.u32 %v1067, 2147483648
        %v1115 = vxor.u32 %v1099, 2147483648
        %v1116 = vxor.u32 %v1038, 2147483648
        %v1117 = vxor.u32 %v1070, 2147483648
        %v1118 = vxor.u32 %v1102, 2147483648
        %v1119 = vmul.f32 %v1107, 1.442695
        %v1120 = vpow.pop %v1119
        %v1121 = vmul.f32 %v1108, 1.442695
        %v1122 = vpow.pop %v1121
        %v1123 = vmul.f32 %v1109, 1.442695
        %v1124 = vpow.pop %v1123
        %v1125 = vmul.f32 %v1110, 1.442695
        %v1126 = vpow.pop %v1125
        %v1127 = vmul.f32 %v1111, 1.442695
        %v1128 = vpow.pop %v1127
        %v1129 = vmul.f32 %v1112, 1.442695
        %v1130 = vpow.pop %v1129
        %v1131 = vmul.f32 %v1113, 1.442695
        %v1132 = vpow.pop %v1131
        %v1133 = vmul.f32 %v1114, 1.442695
        %v1134 = vpow.pop %v1133
        %v1135 = vmul.f32 %v1115, 1.442695
        %v1136 = vpow.pop %v1135
        %v1137 = vmul.f32 %v1116, 1.442695
        %v1138 = vpow.pop %v1137
        %v1139 = vmul.f32 %v1117, 1.442695
        %v1140 = vpow.pop %v1139
        %v1141 = vmul.f32 %v1118, 1.442695
        %v1142 = vpow.pop %v1141
        %v1143 = vadd.f32 %v1120, 1.0
        %v1144 = vadd.f32 %v1122, 1.0
        %v1145 = vadd.f32 %v1124, 1.0
        %v1146 = vadd.f32 %v1126, 1.0
        %v1147 = vadd.f32 %v1128, 1.0
        %v1148 = vadd.f32 %v1130, 1.0
        %v1149 = vadd.f32 %v1132, 1.0
        %v1150 = vadd.f32 %v1134, 1.0
        %v1151 = vadd.f32 %v1136, 1.0
        %v1152 = vadd.f32 %v1138, 1.0
        %v1153 = vadd.f32 %v1140, 1.0
        %v1154 = vadd.f32 %v1142, 1.0
        %v1155 = vrcp.pop %v1143
        %v1156 = vmul.f32 %v1143, %v1155
        %v1157 = vsub.f32 1.0, %v1156
        %v1158 = vmul.f32 %v1155, %v1157
        %v1159 = vadd.f32 %v1155, %v1158
        %vm1160 = vweird.f32 %v1143
        %vm1161 = vweird.f32 %v1155
        %vm1162 = vmor %vm1160, %vm1161
        %v1163 = vsel %vm1162, %v1155, %v1159
        %v1164 = vand.u32 2147483647, %v1143
        %vm1165 = vcmp.eq.f32.partialorder %v1164, 8.507059e+37
        %v1166 = vand.u32 %v1143, 2147483648
        %v1167 = vor.u32 1.1754944e-38, %v1166
        %v1168 = vsel %vm1165, %v1167, %v1163
        %v1169 = vmul.f32 1.0, %v1168
        %v1170 = vrcp.pop %v1144
        %v1171 = vmul.f32 %v1144, %v1170
        %v1172 = vsub.f32 1.0, %v1171
        %v1173 = vmul.f32 %v1170, %v1172
        %v1174 = vadd.f32 %v1170, %v1173
        %vm1175 = vweird.f32 %v1144
        %vm1176 = vweird.f32 %v1170
        %vm1177 = vmor %vm1175, %vm1176
        %v1178 = vsel %vm1177, %v1170, %v1174
        %v1179 = vand.u32 2147483647, %v1144
        %vm1180 = vcmp.eq.f32.partialorder %v1179, 8.507059e+37
        %v1181 = vand.u32 %v1144, 2147483648
        %v1182 = vor.u32 1.1754944e-38, %v1181
        %v1183 = vsel %vm1180, %v1182, %v1178
        %v1184 = vmul.f32 1.0, %v1183
        %v1185 = vrcp.pop %v1145
        %v1186 = vmul.f32 %v1145, %v1185
        %v1187 = vsub.f32 1.0, %v1186
        %v1188 = vmul.f32 %v1185, %v1187
        %v1189 = vadd.f32 %v1185, %v1188
        %vm1190 = vweird.f32 %v1145
        %vm1191 = vweird.f32 %v1185
        %vm1192 = vmor %vm1190, %vm1191
        %v1193 = vsel %vm1192, %v1185, %v1189
        %v1194 = vand.u32 2147483647, %v1145
        %vm1195 = vcmp.eq.f32.partialorder %v1194, 8.507059e+37
        %v1196 = vand.u32 %v1145, 2147483648
        %v1197 = vor.u32 1.1754944e-38, %v1196
        %v1198 = vsel %vm1195, %v1197, %v1193
        %v1199 = vmul.f32 1.0, %v1198
        %v1200 = vrcp.pop %v1146
        %v1201 = vmul.f32 %v1146, %v1200
        %v1202 = vsub.f32 1.0, %v1201
        %v1203 = vmul.f32 %v1200, %v1202
        %v1204 = vadd.f32 %v1200, %v1203
        %vm1205 = vweird.f32 %v1146
        %vm1206 = vweird.f32 %v1200
        %vm1207 = vmor %vm1205, %vm1206
        %v1208 = vsel %vm1207, %v1200, %v1204
        %v1209 = vand.u32 2147483647, %v1146
        %vm1210 = vcmp.eq.f32.partialorder %v1209, 8.507059e+37
        %v1211 = vand.u32 %v1146, 2147483648
        %v1212 = vor.u32 1.1754944e-38, %v1211
        %v1213 = vsel %vm1210, %v1212, %v1208
        %v1214 = vmul.f32 1.0, %v1213
        %v1215 = vrcp.pop %v1147
        %v1216 = vmul.f32 %v1147, %v1215
        %v1217 = vsub.f32 1.0, %v1216
        %v1218 = vmul.f32 %v1215, %v1217
        %v1219 = vadd.f32 %v1215, %v1218
        %vm1220 = vweird.f32 %v1147
        %vm1221 = vweird.f32 %v1215
        %vm1222 = vmor %vm1220, %vm1221
        %v1223 = vsel %vm1222, %v1215, %v1219
        %v1224 = vand.u32 2147483647, %v1147
        %vm1225 = vcmp.eq.f32.partialorder %v1224, 8.507059e+37
        %v1226 = vand.u32 %v1147, 2147483648
        %v1227 = vor.u32 1.1754944e-38, %v1226
        %v1228 = vsel %vm1225, %v1227, %v1223
        %v1229 = vmul.f32 1.0, %v1228
        %v1230 = vrcp.pop %v1148
        %v1231 = vmul.f32 %v1148, %v1230
        %v1232 = vsub.f32 1.0, %v1231
        %v1233 = vmul.f32 %v1230, %v1232
        %v1234 = vadd.f32 %v1230, %v1233
        %vm1235 = vweird.f32 %v1148
        %vm1236 = vweird.f32 %v1230
        %vm1237 = vmor %vm1235, %vm1236
        %v1238 = vsel %vm1237, %v1230, %v1234
        %v1239 = vand.u32 2147483647, %v1148
        %vm1240 = vcmp.eq.f32.partialorder %v1239, 8.507059e+37
        %v1241 = vand.u32 %v1148, 2147483648
        %v1242 = vor.u32 1.1754944e-38, %v1241
        %v1243 = vsel %vm1240, %v1242, %v1238
        %v1244 = vmul.f32 1.0, %v1243
        %v1245 = vrcp.pop %v1149
        %v1246 = vmul.f32 %v1149, %v1245
        %v1247 = vsub.f32 1.0, %v1246
        %v1248 = vmul.f32 %v1245, %v1247
        %v1249 = vadd.f32 %v1245, %v1248
        %vm1250 = vweird.f32 %v1149
        %vm1251 = vweird.f32 %v1245
        %vm1252 = vmor %vm1250, %vm1251
        %v1253 = vsel %vm1252, %v1245, %v1249
        %v1254 = vand.u32 2147483647, %v1149
        %vm1255 = vcmp.eq.f32.partialorder %v1254, 8.507059e+37
        %v1256 = vand.u32 %v1149, 2147483648
        %v1257 = vor.u32 1.1754944e-38, %v1256
        %v1258 = vsel %vm1255, %v1257, %v1253
        %v1259 = vmul.f32 1.0, %v1258
        %v1260 = vrcp.pop %v1150
        %v1261 = vmul.f32 %v1150, %v1260
        %v1262 = vsub.f32 1.0, %v1261
        %v1263 = vmul.f32 %v1260, %v1262
        %v1264 = vadd.f32 %v1260, %v1263
        %vm1265 = vweird.f32 %v1150
        %vm1266 = vweird.f32 %v1260
        %vm1267 = vmor %vm1265, %vm1266
        %v1268 = vsel %vm1267, %v1260, %v1264
        %v1269 = vand.u32 2147483647, %v1150
        %vm1270 = vcmp.eq.f32.partialorder %v1269, 8.507059e+37
        %v1271 = vand.u32 %v1150, 2147483648
        %v1272 = vor.u32 1.1754944e-38, %v1271
        %v1273 = vsel %vm1270, %v1272, %v1268
        %v1274 = vmul.f32 1.0, %v1273
        %v1275 = vrcp.pop %v1151
        %v1276 = vmul.f32 %v1151, %v1275
        %v1277 = vsub.f32 1.0, %v1276
        %v1278 = vmul.f32 %v1275, %v1277
        %v1279 = vadd.f32 %v1275, %v1278
        %vm1280 = vweird.f32 %v1151
        %vm1281 = vweird.f32 %v1275
        %vm1282 = vmor %vm1280, %vm1281
        %v1283 = vsel %vm1282, %v1275, %v1279
        %v1284 = vand.u32 2147483647, %v1151
        %vm1285 = vcmp.eq.f32.partialorder %v1284, 8.507059e+37
        %v1286 = vand.u32 %v1151, 2147483648
        %v1287 = vor.u32 1.1754944e-38, %v1286
        %v1288 = vsel %vm1285, %v1287, %v1283
        %v1289 = vmul.f32 1.0, %v1288
        %v1290 = vrcp.pop %v1152
        %v1291 = vmul.f32 %v1152, %v1290
        %v1292 = vsub.f32 1.0, %v1291
        %v1293 = vmul.f32 %v1290, %v1292
        %v1294 = vadd.f32 %v1290, %v1293
        %vm1295 = vweird.f32 %v1152
        %vm1296 = vweird.f32 %v1290
        %vm1297 = vmor %vm1295, %vm1296
        %v1298 = vsel %vm1297, %v1290, %v1294
        %v1299 = vand.u32 2147483647, %v1152
        %vm1300 = vcmp.eq.f32.partialorder %v1299, 8.507059e+37
        %v1301 = vand.u32 %v1152, 2147483648
        %v1302 = vor.u32 1.1754944e-38, %v1301
        %v1303 = vsel %vm1300, %v1302, %v1298
        %v1304 = vmul.f32 1.0, %v1303
        %v1305 = vrcp.pop %v1153
        %v1306 = vmul.f32 %v1153, %v1305
        %v1307 = vsub.f32 1.0, %v1306
        %v1308 = vmul.f32 %v1305, %v1307
        %v1309 = vadd.f32 %v1305, %v1308
        %vm1310 = vweird.f32 %v1153
        %vm1311 = vweird.f32 %v1305
        %vm1312 = vmor %vm1310, %vm1311
        %v1313 = vsel %vm1312, %v1305, %v1309
        %v1314 = vand.u32 2147483647, %v1153
        %vm1315 = vcmp.eq.f32.partialorder %v1314, 8.507059e+37
        %v1316 = vand.u32 %v1153, 2147483648
        %v1317 = vor.u32 1.1754944e-38, %v1316
        %v1318 = vsel %vm1315, %v1317, %v1313
        %v1319 = vmul.f32 1.0, %v1318
        %v1320 = vrcp.pop %v1154
        %v1321 = vmul.f32 %v1154, %v1320
        %v1322 = vsub.f32 1.0, %v1321
        %v1323 = vmul.f32 %v1320, %v1322
        %v1324 = vadd.f32 %v1320, %v1323
        %vm1325 = vweird.f32 %v1154
        %vm1326 = vweird.f32 %v1320
        %vm1327 = vmor %vm1325, %vm1326
        %v1328 = vsel %vm1327, %v1320, %v1324
        %v1329 = vand.u32 2147483647, %v1154
        %vm1330 = vcmp.eq.f32.partialorder %v1329, 8.507059e+37
        %v1331 = vand.u32 %v1154, 2147483648
        %v1332 = vor.u32 1.1754944e-38, %v1331
        %v1333 = vsel %vm1330, %v1332, %v1328
        %v1334 = vmul.f32 1.0, %v1333
        %v1335 = vmul.f32 %v1169, 1.002
        %v1336 = vmul.f32 %v1184, 1.002
        %v1337 = vmul.f32 %v1199, 1.002
        %v1338 = vmul.f32 %v1214, 1.002
        %v1339 = vmul.f32 %v1229, 1.002
        %v1340 = vmul.f32 %v1244, 1.002
        %v1341 = vmul.f32 %v1259, 1.002
        %v1342 = vmul.f32 %v1274, 1.002
        %v1343 = vmul.f32 %v1289, 1.002
        %v1344 = vmul.f32 %v1304, 1.002
        %v1345 = vmul.f32 %v1319, 1.002
        %v1346 = vmul.f32 %v1334, 1.002
        %v1347 = vsub.f32 %v1335, 0.001
        %v1348 = vsub.f32 %v1336, 0.001
        %v1349 = vsub.f32 %v1337, 0.001
        %v1350 = vsub.f32 %v1338, 0.001
        %v1351 = vsub.f32 %v1339, 0.001
        %v1352 = vsub.f32 %v1340, 0.001
        %v1353 = vsub.f32 %v1341, 0.001
        %v1354 = vsub.f32 %v1342, 0.001
        %v1355 = vsub.f32 %v1343, 0.001
        %v1356 = vsub.f32 %v1344, 0.001
        %v1357 = vsub.f32 %v1345, 0.001
        %v1358 = vsub.f32 %v1346, 0.001
        %1359 = vst [vmem:[%s299] sm:$0xff] %v1347
        %1360 = vst [vmem:[%s299 + $0x8] sm:$0xff] %v1348
        %1361 = vst [vmem:[%s299 + $0x10] sm:$0xff] %v1349
        %1362 = vst [vmem:[%s299 + $0x18] sm:$0xff] %v1350
        %1363 = vst [vmem:[%s299 + $0x20] sm:$0xff] %v1351
        %1364 = vst [vmem:[%s299 + $0x28] sm:$0xff] %v1352
        %1365 = vst [vmem:[%s299 + $0x30] sm:$0xff] %v1353
        %1366 = vst [vmem:[%s299 + $0x38] sm:$0xff] %v1354
        %1367 = vst [vmem:[%s299 + $0x40] sm:$0xff] %v1355
        %1368 = vst [vmem:[%s299 + $0x48] sm:$0xff] %v1356
        %1369 = vst [vmem:[%s299 + $0x50] sm:$0xff] %v1357
        %1370 = vst [vmem:[%s299 + $0x58] sm:$0xff] %v1358
        %v1374 = vrot.slane %v1073, 7
        %v1375 = vrot.slane %v1105, 6
        %vm1376 = vcmask 1040384
        %v1377 = vsel %vm1376, %v1041, %v1374
        %vm1378 = vcmask 1041408
        %v1379 = vsel %vm1378, %v1377, %v1375
        %v1381 = vlaneseq
        %vm1382 = vcmp.ge.s32.totalorder %v1381, 0
        %vm1383 = vcmp.lt.s32.totalorder %v1381, 384
        %vm1384 = vmand %vm1382, %vm1383
        %1385 = vst.msk [vmem:[%s292] sm:$0x7] %vm1384, %v1379
        %s1386 = sand.u32 %s159, 1
        %s1387 = scalar_lea.sflag [#allocation4], %s1386
        %s1388 = sand.u32 %s159, 1
        %s1389 = smul.addr %s1388, 3
        %s1390 = scalar_lea.vmem [#allocation5], %s1389
        %s1391 = sand.u32 %s187, 1
        %s1392 = scalar_lea.sflag [#allocation7], %s1391
        %s1393 = sand.u32 %s187, 1
        %s1394 = smul.addr %s1393, 96
        %s1395 = scalar_lea.vmem [#allocation6], %s1394
        // Predicated region
        $region45: #{tpu_custom_call.1} parent=39 // pred_check
          %p1396 = pneg %p169
        $region46: #{tpu_custom_call.1} parent=39 // pred_check_branch
          %1398 = sbr.rel (%p1396) target = $region48
        $region47: #{tpu_custom_call.1} parent=39 // pred_region
          %s1399 = smul.u32 3, %s30
          %1401 = vsyncadd %s1387, 0
          %s1402 = smul.addr %s29, 3
          %s1403 = sadd.s32 %s1399, %s1402
          %s1404 = scalar_lea.hbm %s5, %s1403
          %s1406 = sshll.u32 %s1390, 4
          %s1407 = int_to_ptr.vmem [resolvable:$true] %s1406
          %s1408 = sshll.u32 %s1404, 4
          %s1409 = int_to_ptr.hbm [resolvable:$true] %s1408
          %1411 = dma.vmem_to_hbm [thread:$0]  %s1407, 48, %s1409, %s1387
        $region48: #{tpu_custom_call.1} parent=39 // pred_fallthru
          _
        // Predicated region
        $region49: #{tpu_custom_call.1} parent=39 // pred_check
          %p1412 = pneg %p197
        $region50: #{tpu_custom_call.1} parent=39 // pred_check_branch
          %1414 = sbr.rel (%p1412) target = $region52
        $region51: #{tpu_custom_call.1} parent=39 // pred_region
          %s1415 = smul.u32 3, %s30
          %1417 = vsyncadd %s1392, 0
          %s1418 = smul.addr %s29, 12
          %s1419 = sadd.s32 %s1415, %s1418
          %s1420 = smul.addr %s1419, 8
          %s1421 = scalar_lea.hbm %s6, %s1420
          %s1422 = sshll.u32 %s1395, 4
          %s1423 = int_to_ptr.vmem [resolvable:$true] %s1422
          %s1424 = sshll.u32 %s1421, 4
          %s1425 = int_to_ptr.hbm [resolvable:$true] %s1424
          %1430 = dma.vmem_to_hbm [thread:$0]  %s1423, 1536, %s1425, %s1392, 384, 384, 24
        $region52: #{tpu_custom_call.1} parent=39 // pred_fallthru
          _
      $region40: #{tpu_custom_call.1} parent=5 // pred_fallthru
        _
      %p1431 = scmp.le.s32.totalorder 2, %s20
      // Predicated region
      $region53: #{tpu_custom_call.1} parent=5 // pred_check
        %p1432 = pneg %p1431
      $region54: #{tpu_custom_call.1} parent=5 // pred_check_branch
        %1434 = sbr.rel (%p1432) target = $region56
      $region55: #{tpu_custom_call.1} parent=5 // pred_region
        %s1435 = ssub.s32 %s20, 2
        // Predicated region
        $region57: #{tpu_custom_call.1} parent=55 // pred_check
          %p1436 = pneg %p175
        $region58: #{tpu_custom_call.1} parent=55 // pred_check_branch
          %1438 = sbr.rel (%p1436) target = $region60
        $region59: #{tpu_custom_call.1} parent=55 // pred_region
          %s1439 = sand.u32 %s160, 1
          %s1440 = scalar_lea.sflag [#allocation4], %s1439
          %s1441 = sand.u32 %s160, 1
          %s1442 = smul.addr %s1441, 3
          %s1443 = scalar_lea.vmem [#allocation5], %s1442
          %1445 = dma.done %s1440, 48
        $region60: #{tpu_custom_call.1} parent=55 // pred_fallthru
          _
        // Predicated region
        $region61: #{tpu_custom_call.1} parent=55 // pred_check
          %p1446 = pneg %p203
        $region62: #{tpu_custom_call.1} parent=55 // pred_check_branch
          %1448 = sbr.rel (%p1446) target = $region64
        $region63: #{tpu_custom_call.1} parent=55 // pred_region
          %s1449 = sand.u32 %s188, 1
          %s1450 = scalar_lea.sflag [#allocation7], %s1449
          %s1451 = sand.u32 %s188, 1
          %s1452 = smul.addr %s1451, 96
          %s1453 = scalar_lea.vmem [#allocation6], %s1452
          %1455 = dma.done %s1450, 1536
        $region64: #{tpu_custom_call.1} parent=55 // pred_fallthru
          _
      $region56: #{tpu_custom_call.1} parent=5 // pred_fallthru
        _
    $region6: #{tpu_custom_call.1} parent=1 // loop_footer
      %s24 = sadd.s32 1, %s20
    $region7: #{tpu_custom_call.1} parent=1 // loop_footer_branch
      %19 = sbr.rel target = $region3
    $region8: #{tpu_custom_call.1} parent=1 // loop_exit
      _
    %1456 = vsyncpa [#allocation3], 1
    %s1457 = scalar_lea.sflag [#allocation3], 1
    %1458 = vsyncpa %s1457, 1
    %1459 = vsyncpa [#allocation4], 1
    %s1460 = scalar_lea.sflag [#allocation4], 1
    %1461 = vsyncpa %s1460, 1
    %1462 = vsyncpa [#allocation7], 1
    %s1463 = scalar_lea.sflag [#allocation7], 1
    %1464 = vsyncpa %s1463, 1

</llo_original>
